<compile_context>
chip_gen: v5e
topology: v5e:2x2
jax: 0.10.0
libtpu: 0.0.40
codegen_flags: <defaults>
</compile_context>

<pallas_src>
import functools

import jax
import jax.numpy as jnp
from jax import lax
from jax.experimental import pallas as pl
from jax.experimental.pallas import tpu as pltpu


_LANE_GROUP = 256      # v6e/v7x MXU lane width (also a multiple of v5e's 128)
_MIN_GRID_STEPS = 4    # keep >=4 grid steps so both v7x TensorCores get work


def _choose_batch_tile(batch, requested):
    """Lane-group-aligned batch tile, capped so the grid keeps a few steps."""
    requested = max(_LANE_GROUP, (int(requested) // _LANE_GROUP) * _LANE_GROUP)
    # Cap the tile so the grid has >= _MIN_GRID_STEPS steps when the batch is
    # large enough (megacore sharding on v7x + pipeline overlap), but never go
    # below one 256-lane group.
    per_step = pl.cdiv(int(batch), _MIN_GRID_STEPS)
    per_step = pl.cdiv(per_step, _LANE_GROUP) * _LANE_GROUP
    return max(_LANE_GROUP, min(requested, per_step))


def _dnn_kernel(num_layers, compute_dtype, precision, fused_input, *refs):
    """refs = (x_ref, w0, b0, w1, b1, ..., w_{L-1}, b_{L-1}, out_ref).

    Layouts:
      x_ref:   (Bt, N_in) if fused_input else (N_in, Bt)
      w_i:     (out_i, in_i)   (native PyTorch nn.Linear layout)
      b_i:     (out_i, 1)      broadcast over the lane (batch) axis
      out_ref: (N_out, Bt)     batch-on-lanes -> dense, unmasked stores
    """
    x_ref = refs[0]
    out_ref = refs[-1]
    params = refs[1:-1]

    x = x_ref[...]
    w0 = params[0][...]        # (N_h, N_in)
    b0 = params[1][...]        # (N_h, 1) float32

    if fused_input:
        # x: (Bt, N_in).  Contract the tiny feature axis of both operands
        # (trans-B dot, same dimension numbers as flash attention's q @ k^T).
        # Result is already batch-on-lanes (N_h, Bt): no transpose of x is
        # ever materialized, neither in the wrapper nor in the kernel.
        y = lax.dot_general(
            w0, x, (((1,), (1,)), ((), ())),
            preferred_element_type=jnp.float32, precision=precision)
    else:
        # Fallback layout: x is (N_in, Bt), pre-transposed by the wrapper.
        n_in = x.shape[0]
        if n_in <= 4:
            # K = N_in is tiny (2 for every PDE in the module): do layer 0 on
            # the VPU as broadcast multiply-adds instead of a nearly empty MXU
            # push, freeing the MXU/vex slot for the 32x32 hidden layers.
            y = w0[:, 0:1] * x[0:1, :]
            for k in range(1, n_in):
                y = y + w0[:, k:k + 1] * x[k:k + 1, :]
        else:
            y = jnp.dot(w0, x, preferred_element_type=jnp.float32,
                        precision=precision)
    y = y + b0                                     # (N_h, Bt) float32

    for i in range(1, num_layers):
        h = jnp.tanh(y.astype(compute_dtype))      # hidden activation: tanh
        w = params[2 * i][...]                     # (out_i, in_i)
        b = params[2 * i + 1][...]                 # (out_i, 1) float32
        y = jnp.dot(w, h, preferred_element_type=jnp.float32,
                    precision=precision) + b

    # Output activation is 'linear' (identity).
    out_ref[...] = y.astype(out_ref.dtype)


def _dnn_forward_impl(x, weights, biases, *, batch_tile, compute_dtype,
                      fused_input):
    B, n_in = x.shape
    num_layers = len(weights)
    n_out = weights[-1].shape[0]
    n_hidden = weights[0].shape[0]
    compute_dtype = jnp.dtype(compute_dtype)

    tile = _choose_batch_tile(B, batch_tile)
    B_pad = pl.cdiv(B, tile) * tile
    grid = (B_pad // tile,)

    x_in = x.astype(compute_dtype)
    if B_pad != B:
        # Zero-pad ragged batches; padded lanes are sliced off after the call
        # and never participate in any cross-lane reduction.
        x_in = jnp.pad(x_in, ((0, B_pad - B), (0, 0)))

    if fused_input:
        x_spec = pl.BlockSpec((tile, n_in), lambda i: (i, 0))
    else:
        # Fallback: one extra XLA pass over x to present it as (N_in, B).
        x_in = x_in.T
        x_spec = pl.BlockSpec((n_in, tile), lambda i: (0, i))

    in_specs = [x_spec]
    operands = [x_in]
    for w, b in zip(weights, biases):
        # Constant index_map -> parameters are DMA'd once and stay resident in
        # VMEM; block == full array shape, so no (8,128) divisibility issue.
        in_specs.append(pl.BlockSpec(w.shape, lambda i: (0, 0)))
        in_specs.append(pl.BlockSpec(b.shape, lambda i: (0, 0)))
        operands.append(jnp.asarray(w, compute_dtype))
        operands.append(jnp.asarray(b, jnp.float32))

    out_spec = pl.BlockSpec((n_out, tile), lambda i: (0, i))

    # Explicit precision: HIGHEST for f32 (PyTorch f32 Linear parity); DEFAULT
    # single-pass when the caller opts into bf16 compute (v6e/v7x only).
    precision = (lax.Precision.HIGHEST if compute_dtype == jnp.dtype(jnp.float32)
                 else lax.Precision.DEFAULT)

    # Cost hint for XLA's scheduler around this custom call.
    itemsize = compute_dtype.itemsize
    macs = sum(int(w.shape[0]) * int(w.shape[1]) for w in weights)
    flops = 2 * B_pad * macs
    transcendentals = B_pad * n_hidden * max(num_layers - 1, 0)
    param_bytes = sum(int(w.size) * itemsize + int(b.size) * 4
                      for w, b in zip(weights, biases))
    bytes_accessed = B_pad * (n_in * itemsize + n_out * 4) + param_bytes
    cost = pl.CostEstimate(flops=flops, transcendentals=transcendentals,
                           bytes_accessed=bytes_accessed)

    kernel = functools.partial(_dnn_kernel, num_layers, compute_dtype,
                               precision, fused_input)
    out_t = pl.pallas_call(
        kernel,
        out_shape=jax.ShapeDtypeStruct((n_out, B_pad), jnp.float32),
        grid_spec=pltpu.PrefetchScalarGridSpec(
            num_scalar_prefetch=0,
            grid=grid,
            in_specs=in_specs,
            out_specs=out_spec,
        ),
        compiler_params=pltpu.CompilerParams(
            dimension_semantics=("parallel",),
            # Per-step footprint at the 8192-lane default is ~12 MiB (the
            # (Bt, 2) input block is lane-padded in VMEM); 32 MiB is safe on
            # v5e/v6e (128 MiB) and v7x (64 MiB).
            vmem_limit_bytes=32 * 1024 * 1024,
        ),
        cost_estimate=cost,
    )(*operands)

    # Back to the caller's (B, N_out) layout, dropping batch padding.  For
    # N_out <= 3 this final transpose is effectively a reshape.
    return out_t[:, :B].T


@functools.lru_cache(maxsize=None)
def _fused_input_supported():
    """Probe (once per process) whether the transposed-RHS layer-0 dot lowers
    and is numerically correct on this toolchain; otherwise fall back."""
    try:
        key = jax.random.PRNGKey(0)
        kw0, kw1, kx = jax.random.split(key, 3)
        w = [0.5 * jax.random.normal(kw0, (8, 2), jnp.float32),
             0.5 * jax.random.normal(kw1, (1, 8), jnp.float32)]
        b = [jnp.zeros((8, 1), jnp.float32), jnp.zeros((1, 1), jnp.float32)]
        x = jax.random.normal(kx, (16, 2), jnp.float32)
        out = _dnn_forward_impl(x, w, b, batch_tile=256,
                                compute_dtype=jnp.float32, fused_input=True)
        out = jax.block_until_ready(out)
        ref = dnn_reference(x, w, b)
        return bool(jnp.allclose(out, ref, atol=1e-5, rtol=1e-5))
    except Exception:
        return False


def dnn_forward(x, weights, biases, *, batch_tile=8192,
                compute_dtype=jnp.float32):
    """Full MLP forward in one Pallas kernel (batch on lanes, tiled over batch).

    Args:
      x:       (B, N_in) array.
      weights: list of (out_i, in_i) float32 arrays (PyTorch Linear layout).
      biases:  list of (out_i, 1) float32 arrays.
      batch_tile: requested lane tile for the batch axis (rounded to x256 and
        capped so the grid keeps >= 4 steps).
      compute_dtype: jnp.float32 (default; matches PyTorch) or jnp.bfloat16
        (accuracy/speed trade, intended for v6e/v7x which have bf16 VPU/EUP).
    Returns:
      (B, N_out) float32.
    """
    fused = _fused_input_supported()
    return _dnn_forward_impl(x, weights, biases, batch_tile=batch_tile,
                             compute_dtype=compute_dtype, fused_input=fused)


def init_dnn_params(key, n_in, n_hidden, n_out, n_layers):
    """Deterministic init matching nn.Linear default U(-1/sqrt(in), 1/sqrt(in)).

    Weights use the PyTorch (out, in) layout; biases are (out, 1).
    """
    dims = [n_in] + [n_hidden] * (n_layers - 1) + [n_out]
    weights, biases = [], []
    for i in range(n_layers):
        fan_in, fan_out = dims[i], dims[i + 1]
        key, kw, kb = jax.random.split(key, 3)
        bound = 1.0 / jnp.sqrt(jnp.float32(fan_in))
        weights.append(jax.random.uniform(kw, (fan_out, fan_in), jnp.float32,
                                          -bound, bound))
        biases.append(jax.random.uniform(kb, (fan_out, 1), jnp.float32,
                                         -bound, bound))
    return weights, biases


def dnn_reference(x, weights, biases):
    """Pure-JAX reference matching the PyTorch forward (x @ W.T + b), at
    HIGHEST matmul precision to reproduce f32 nn.Linear numerics."""
    h = x
    for i, (w, b) in enumerate(zip(weights, biases)):
        y = jnp.dot(h, w.T, precision=lax.Precision.HIGHEST) + b.T
        h = y if i == len(weights) - 1 else jnp.tanh(y)
    return h


if __name__ == "__main__":
    # Equivalent settings: pde='Burger' -> (N_in, N_out) = (2, 1);
    # settings.nn = {'neurons': 32, 'layers': 4,
    #                'activation': {'hidden': 'tanh', 'output': 'linear'}}
    N_IN, N_OUT = 2, 1
    NEURONS = 32
    NUM_LAYERS = 4          # Linear(2,32) + 2x Linear(32,32) + Linear(32,1)

    key = jax.random.PRNGKey(0)
    key, kx_small, kx_mid, kx_big = jax.random.split(key, 4)
    weights, biases = init_dnn_params(key, N_IN, NEURONS, N_OUT, NUM_LAYERS)

    # Case 1: tiny ragged batch -> single 256-lane tile, pad-and-slice path.
    x_small = jax.random.normal(kx_small, (8, N_IN), jnp.float32)
    out_small = jax.block_until_ready(dnn_forward(x_small, weights, biases))
    ref_small = dnn_reference(x_small, weights, biases)
    assert out_small.shape == (8, N_OUT), out_small.shape
    assert jnp.allclose(out_small, ref_small, atol=1e-5, rtol=1e-5)

    # Case 2: mid-size batch -> auto tile keeps >=4 grid steps (v7x megacore).
    x_mid = jax.random.normal(kx_mid, (1024, N_IN), jnp.float32)
    out_mid = jax.block_until_ready(dnn_forward(x_mid, weights, biases))
    ref_mid = dnn_reference(x_mid, weights, biases)
    assert out_mid.shape == (1024, N_OUT), out_mid.shape
    assert jnp.allclose(out_mid, ref_mid, atol=1e-5, rtol=1e-5)

    # Case 3: larger batch -> full 8192-lane tiles, multi-step pipelined grid.
    x_big = jax.random.normal(kx_big, (32768, N_IN), jnp.float32)
    out_big = jax.block_until_ready(dnn_forward(x_big, weights, biases))
    ref_big = dnn_reference(x_big, weights, biases)
    assert out_big.shape == (32768, N_OUT), out_big.shape
    assert jnp.allclose(out_big, ref_big, atol=1e-5, rtol=1e-5)

    # TODO(synk): the module's `.to(self.processor)` device move and __verbose
    # pretty-printing are host-side concerns with no kernel equivalent.
    print("KERNEL_OK")
</pallas_src>

<mosaic_0001>
module attributes {stable_mosaic.version = 11 : i64} {
  func.func @_dnn_kernel(%arg0: i32, %arg1: memref<256x2xf32, #tpu.memory_space<vmem>>, %arg2: memref<8x2xf32, #tpu.memory_space<vmem>>, %arg3: memref<8x1xf32, #tpu.memory_space<vmem>>, %arg4: memref<1x8xf32, #tpu.memory_space<vmem>>, %arg5: memref<1x1xf32, #tpu.memory_space<vmem>>, %arg6: memref<1x256xf32, #tpu.memory_space<vmem>>) attributes {dimension_semantics = [#tpu.dimension_semantics<parallel>], iteration_bounds = array<i64: 1>, scalar_prefetch = 0 : i64, scratch_operands = 0 : i64, tpu.core_type = #tpu.core_type<tc>, window_params = [{transform_indices = @transform_0, window_bounds = array<i64: 256, 2>}, {pipeline_mode = #tpu.pipeline_mode<synchronous>, transform_indices = @transform_1, window_bounds = array<i64: 8, 2>}, {pipeline_mode = #tpu.pipeline_mode<synchronous>, transform_indices = @transform_2, window_bounds = array<i64: 8, 1>}, {pipeline_mode = #tpu.pipeline_mode<synchronous>, transform_indices = @transform_3, window_bounds = array<i64: 1, 8>}, {pipeline_mode = #tpu.pipeline_mode<synchronous>, transform_indices = @transform_4, window_bounds = array<i64: 1, 1>}, {transform_indices = @transform_5, window_bounds = array<i64: 1, 256>}]} {
    %c0 = arith.constant 0 : index
    %c0_0 = arith.constant 0 : index
    %0 = vector.load %arg1[%c0, %c0_0] : memref<256x2xf32, #tpu.memory_space<vmem>>, vector<256x2xf32>
    %c0_1 = arith.constant 0 : index
    %c0_2 = arith.constant 0 : index
    %1 = vector.load %arg2[%c0_1, %c0_2] : memref<8x2xf32, #tpu.memory_space<vmem>>, vector<8x2xf32>
    %c0_3 = arith.constant 0 : index
    %c0_4 = arith.constant 0 : index
    %2 = vector.load %arg3[%c0_3, %c0_4] : memref<8x1xf32, #tpu.memory_space<vmem>>, vector<8x1xf32>
    %cst = arith.constant dense<0.000000e+00> : vector<8x256xf32>
    %3 = tpu.matmul %1, %0, %cst {dimension_numbers = #tpu.dot_dimension_numbers<[1], [1], [0], [0], [0, 0, 1, 0], [], []>, precision = #tpu.contract_precision<fp32>} : vector<8x2xf32>, vector<256x2xf32>, vector<8x256xf32> -> vector<8x256xf32>
    %4 = vector.broadcast %2 : vector<8x1xf32> to vector<8x256xf32>
    %5 = arith.addf %3, %4 : vector<8x256xf32>
    %6 = math.tanh %5 : vector<8x256xf32>
    %c0_5 = arith.constant 0 : index
    %c0_6 = arith.constant 0 : index
    %7 = vector.load %arg4[%c0_5, %c0_6] : memref<1x8xf32, #tpu.memory_space<vmem>>, vector<1x8xf32>
    %c0_7 = arith.constant 0 : index
    %c0_8 = arith.constant 0 : index
    %8 = vector.load %arg5[%c0_7, %c0_8] : memref<1x1xf32, #tpu.memory_space<vmem>>, vector<1x1xf32>
    %cst_9 = arith.constant dense<0.000000e+00> : vector<1x256xf32>
    %9 = tpu.matmul %7, %6, %cst_9 {dimension_numbers = #tpu.dot_dimension_numbers<[1], [0], [0], [1], [0, 0, 1, 1], [], []>, precision = #tpu.contract_precision<fp32>} : vector<1x8xf32>, vector<8x256xf32>, vector<1x256xf32> -> vector<1x256xf32>
    %10 = vector.broadcast %8 : vector<1x1xf32> to vector<1x256xf32>
    %11 = arith.addf %9, %10 : vector<1x256xf32>
    %c0_10 = arith.constant 0 : index
    %c0_11 = arith.constant 0 : index
    %12 = vector.load %arg6[%c0_10, %c0_11] : memref<1x256xf32, #tpu.memory_space<vmem>>, vector<1x256xf32>
    tpu.vector_store %arg6[%c0_10, %c0_11], %11 {strides = array<i32>} : memref<1x256xf32, #tpu.memory_space<vmem>>, vector<1x256xf32>,
    return
  }
  func.func @transform_0(%arg0: i32) -> (i32, i32) {
    %c0_i32 = arith.constant 0 : i32
    %c0_i32_0 = arith.constant 0 : i32
    return %arg0, %c0_i32 : i32, i32
  }
  func.func @transform_1(%arg0: i32) -> (i32, i32) {
    %c0_i32 = arith.constant 0 : i32
    %c0_i32_0 = arith.constant 0 : i32
    %c0_i32_1 = arith.constant 0 : i32
    return %c0_i32, %c0_i32_0 : i32, i32
  }
  func.func @transform_2(%arg0: i32) -> (i32, i32) {
    %c0_i32 = arith.constant 0 : i32
    %c0_i32_0 = arith.constant 0 : i32
    %c0_i32_1 = arith.constant 0 : i32
    return %c0_i32, %c0_i32_0 : i32, i32
  }
  func.func @transform_3(%arg0: i32) -> (i32, i32) {
    %c0_i32 = arith.constant 0 : i32
    %c0_i32_0 = arith.constant 0 : i32
    %c0_i32_1 = arith.constant 0 : i32
    return %c0_i32, %c0_i32_0 : i32, i32
  }
  func.func @transform_4(%arg0: i32) -> (i32, i32) {
    %c0_i32 = arith.constant 0 : i32
    %c0_i32_0 = arith.constant 0 : i32
    %c0_i32_1 = arith.constant 0 : i32
    return %c0_i32, %c0_i32_0 : i32, i32
  }
  func.func @transform_5(%arg0: i32) -> (i32, i32) {
    %c0_i32 = arith.constant 0 : i32
    %c0_i32_0 = arith.constant 0 : i32
    return %c0_i32, %arg0 : i32, i32
  }
}

module attributes {stable_mosaic.version = 11 : i64} {
  func.func @_dnn_kernel(%arg0: i32, %arg1: memref<2x256xf32, #tpu.memory_space<vmem>>, %arg2: memref<32x2xf32, #tpu.memory_space<vmem>>, %arg3: memref<32x1xf32, #tpu.memory_space<vmem>>, %arg4: memref<32x32xf32, #tpu.memory_space<vmem>>, %arg5: memref<32x1xf32, #tpu.memory_space<vmem>>, %arg6: memref<32x32xf32, #tpu.memory_space<vmem>>, %arg7: memref<32x1xf32, #tpu.memory_space<vmem>>, %arg8: memref<1x32xf32, #tpu.memory_space<vmem>>, %arg9: memref<1x1xf32, #tpu.memory_space<vmem>>, %arg10: memref<1x256xf32, #tpu.memory_space<vmem>>) attributes {dimension_semantics = [#tpu.dimension_semantics<parallel>], iteration_bounds = array<i64: 1>, scalar_prefetch = 0 : i64, scratch_operands = 0 : i64, tpu.core_type = #tpu.core_type<tc>, window_params = [{transform_indices = @transform_0, window_bounds = array<i64: 2, 256>}, {pipeline_mode = #tpu.pipeline_mode<synchronous>, transform_indices = @transform_1, window_bounds = array<i64: 32, 2>}, {pipeline_mode = #tpu.pipeline_mode<synchronous>, transform_indices = @transform_2, window_bounds = array<i64: 32, 1>}, {pipeline_mode = #tpu.pipeline_mode<synchronous>, transform_indices = @transform_3, window_bounds = array<i64: 32, 32>}, {pipeline_mode = #tpu.pipeline_mode<synchronous>, transform_indices = @transform_4, window_bounds = array<i64: 32, 1>}, {pipeline_mode = #tpu.pipeline_mode<synchronous>, transform_indices = @transform_5, window_bounds = array<i64: 32, 32>}, {pipeline_mode = #tpu.pipeline_mode<synchronous>, transform_indices = @transform_6, window_bounds = array<i64: 32, 1>}, {pipeline_mode = #tpu.pipeline_mode<synchronous>, transform_indices = @transform_7, window_bounds = array<i64: 1, 32>}, {pipeline_mode = #tpu.pipeline_mode<synchronous>, transform_indices = @transform_8, window_bounds = array<i64: 1, 1>}, {transform_indices = @transform_9, window_bounds = array<i64: 1, 256>}]} {
    %c0 = arith.constant 0 : index
    %c0_0 = arith.constant 0 : index
    %0 = vector.load %arg1[%c0, %c0_0] : memref<2x256xf32, #tpu.memory_space<vmem>>, vector<2x256xf32>
    %c0_1 = arith.constant 0 : index
    %c0_2 = arith.constant 0 : index
    %1 = vector.load %arg2[%c0_1, %c0_2] : memref<32x2xf32, #tpu.memory_space<vmem>>, vector<32x2xf32>
    %c0_3 = arith.constant 0 : index
    %c0_4 = arith.constant 0 : index
    %2 = vector.load %arg3[%c0_3, %c0_4] : memref<32x1xf32, #tpu.memory_space<vmem>>, vector<32x1xf32>
    %3 = vector.extract_strided_slice %1 {offsets = [0, 0], sizes = [32, 1], strides = [1, 1]} : vector<32x2xf32> to vector<32x1xf32>
    %4 = vector.extract_strided_slice %0 {offsets = [0, 0], sizes = [1, 256], strides = [1, 1]} : vector<2x256xf32> to vector<1x256xf32>
    %5 = vector.broadcast %3 : vector<32x1xf32> to vector<32x256xf32>
    %6 = vector.broadcast %4 : vector<1x256xf32> to vector<32x256xf32>
    %7 = arith.mulf %5, %6 : vector<32x256xf32>
    %8 = vector.extract_strided_slice %1 {offsets = [0, 1], sizes = [32, 1], strides = [1, 1]} : vector<32x2xf32> to vector<32x1xf32>
    %9 = vector.extract_strided_slice %0 {offsets = [1, 0], sizes = [1, 256], strides = [1, 1]} : vector<2x256xf32> to vector<1x256xf32>
    %10 = vector.broadcast %8 : vector<32x1xf32> to vector<32x256xf32>
    %11 = vector.broadcast %9 : vector<1x256xf32> to vector<32x256xf32>
    %12 = arith.mulf %10, %11 : vector<32x256xf32>
    %13 = arith.addf %7, %12 : vector<32x256xf32>
    %14 = vector.broadcast %2 : vector<32x1xf32> to vector<32x256xf32>
    %15 = arith.addf %13, %14 : vector<32x256xf32>
    %16 = math.tanh %15 : vector<32x256xf32>
    %c0_5 = arith.constant 0 : index
    %c0_6 = arith.constant 0 : index
    %17 = vector.load %arg4[%c0_5, %c0_6] : memref<32x32xf32, #tpu.memory_space<vmem>>, vector<32x32xf32>
    %c0_7 = arith.constant 0 : index
    %c0_8 = arith.constant 0 : index
    %18 = vector.load %arg5[%c0_7, %c0_8] : memref<32x1xf32, #tpu.memory_space<vmem>>, vector<32x1xf32>
    %cst = arith.constant dense<0.000000e+00> : vector<32x256xf32>
    %19 = tpu.matmul %17, %16, %cst {dimension_numbers = #tpu.dot_dimension_numbers<[1], [0], [0], [1], [0, 0, 1, 1], [], []>, precision = #tpu.contract_precision<fp32>} : vector<32x32xf32>, vector<32x256xf32>, vector<32x256xf32> -> vector<32x256xf32>
    %20 = vector.broadcast %18 : vector<32x1xf32> to vector<32x256xf32>
    %21 = arith.addf %19, %20 : vector<32x256xf32>
    %22 = math.tanh %21 : vector<32x256xf32>
    %c0_9 = arith.constant 0 : index
    %c0_10 = arith.constant 0 : index
    %23 = vector.load %arg6[%c0_9, %c0_10] : memref<32x32xf32, #tpu.memory_space<vmem>>, vector<32x32xf32>
    %c0_11 = arith.constant 0 : index
    %c0_12 = arith.constant 0 : index
    %24 = vector.load %arg7[%c0_11, %c0_12] : memref<32x1xf32, #tpu.memory_space<vmem>>, vector<32x1xf32>
    %cst_13 = arith.constant dense<0.000000e+00> : vector<32x256xf32>
    %25 = tpu.matmul %23, %22, %cst_13 {dimension_numbers = #tpu.dot_dimension_numbers<[1], [0], [0], [1], [0, 0, 1, 1], [], []>, precision = #tpu.contract_precision<fp32>} : vector<32x32xf32>, vector<32x256xf32>, vector<32x256xf32> -> vector<32x256xf32>
    %26 = vector.broadcast %24 : vector<32x1xf32> to vector<32x256xf32>
    %27 = arith.addf %25, %26 : vector<32x256xf32>
    %28 = math.tanh %27 : vector<32x256xf32>
    %c0_14 = arith.constant 0 : index
    %c0_15 = arith.constant 0 : index
    %29 = vector.load %arg8[%c0_14, %c0_15] : memref<1x32xf32, #tpu.memory_space<vmem>>, vector<1x32xf32>
    %c0_16 = arith.constant 0 : index
    %c0_17 = arith.constant 0 : index
    %30 = vector.load %arg9[%c0_16, %c0_17] : memref<1x1xf32, #tpu.memory_space<vmem>>, vector<1x1xf32>
    %cst_18 = arith.constant dense<0.000000e+00> : vector<1x256xf32>
    %31 = tpu.matmul %29, %28, %cst_18 {dimension_numbers = #tpu.dot_dimension_numbers<[1], [0], [0], [1], [0, 0, 1, 1], [], []>, precision = #tpu.contract_precision<fp32>} : vector<1x32xf32>, vector<32x256xf32>, vector<1x256xf32> -> vector<1x256xf32>
    %32 = vector.broadcast %30 : vector<1x1xf32> to vector<1x256xf32>
    %33 = arith.addf %31, %32 : vector<1x256xf32>
    %c0_19 = arith.constant 0 : index
    %c0_20 = arith.constant 0 : index
    %34 = vector.load %arg10[%c0_19, %c0_20] : memref<1x256xf32, #tpu.memory_space<vmem>>, vector<1x256xf32>
    tpu.vector_store %arg10[%c0_19, %c0_20], %33 {strides = array<i32>} : memref<1x256xf32, #tpu.memory_space<vmem>>, vector<1x256xf32>,
    return
  }
  func.func @transform_0(%arg0: i32) -> (i32, i32) {
    %c0_i32 = arith.constant 0 : i32
    %c0_i32_0 = arith.constant 0 : i32
    return %c0_i32, %arg0 : i32, i32
  }
  func.func @transform_1(%arg0: i32) -> (i32, i32) {
    %c0_i32 = arith.constant 0 : i32
    %c0_i32_0 = arith.constant 0 : i32
    %c0_i32_1 = arith.constant 0 : i32
    return %c0_i32, %c0_i32_0 : i32, i32
  }
  func.func @transform_2(%arg0: i32) -> (i32, i32) {
    %c0_i32 = arith.constant 0 : i32
    %c0_i32_0 = arith.constant 0 : i32
    %c0_i32_1 = arith.constant 0 : i32
    return %c0_i32, %c0_i32_0 : i32, i32
  }
  func.func @transform_3(%arg0: i32) -> (i32, i32) {
    %c0_i32 = arith.constant 0 : i32
    %c0_i32_0 = arith.constant 0 : i32
    %c0_i32_1 = arith.constant 0 : i32
    return %c0_i32, %c0_i32_0 : i32, i32
  }
  func.func @transform_4(%arg0: i32) -> (i32, i32) {
    %c0_i32 = arith.constant 0 : i32
    %c0_i32_0 = arith.constant 0 : i32
    %c0_i32_1 = arith.constant 0 : i32
    return %c0_i32, %c0_i32_0 : i32, i32
  }
  func.func @transform_5(%arg0: i32) -> (i32, i32) {
    %c0_i32 = arith.constant 0 : i32
    %c0_i32_0 = arith.constant 0 : i32
    %c0_i32_1 = arith.constant 0 : i32
    return %c0_i32, %c0_i32_0 : i32, i32
  }
  func.func @transform_6(%arg0: i32) -> (i32, i32) {
    %c0_i32 = arith.constant 0 : i32
    %c0_i32_0 = arith.constant 0 : i32
    %c0_i32_1 = arith.constant 0 : i32
    return %c0_i32, %c0_i32_0 : i32, i32
  }
  func.func @transform_7(%arg0: i32) -> (i32, i32) {
    %c0_i32 = arith.constant 0 : i32
    %c0_i32_0 = arith.constant 0 : i32
    %c0_i32_1 = arith.constant 0 : i32
    return %c0_i32, %c0_i32_0 : i32, i32
  }
  func.func @transform_8(%arg0: i32) -> (i32, i32) {
    %c0_i32 = arith.constant 0 : i32
    %c0_i32_0 = arith.constant 0 : i32
    %c0_i32_1 = arith.constant 0 : i32
    return %c0_i32, %c0_i32_0 : i32, i32
  }
  func.func @transform_9(%arg0: i32) -> (i32, i32) {
    %c0_i32 = arith.constant 0 : i32
    %c0_i32_0 = arith.constant 0 : i32
    return %c0_i32, %arg0 : i32, i32
  }
}

</mosaic_0001>

<llo_original>
// kernel: tpu_custom_call.1
$region0: #{tpu_custom_call.1}
  #allocation0 [shape = 'u32[]', space=smem, size = 0x4, offset = 0x4, fixed_abs, tag = 'smem constant byte address 0x4 - core index']
  #allocation1 [shape = 'u32[72,128]{1,0:T(1,128)}', space=vmem, size = 0x9000, scoped, tag = 'internal scratch']
  #allocation2 [shape = 'f32[1,1]{1,0:T(1,128)S(1)}', space=vmem, size = 0x200, scoped, tag = 'scoped memory for tpu_custom_call.1']
  %s0 = inlined_call_operand.vmem [shape: f32[256,2], index: 0, kind: input, shape index: {}]
  %s1 = inlined_call_operand.vmem [shape: f32[8,2], index: 1, kind: input, shape index: {}]
  %s2 = inlined_call_operand.vmem [shape: f32[8,1], index: 2, kind: input, shape index: {}]
  %s3 = inlined_call_operand.vmem [shape: f32[1,8], index: 3, kind: input, shape index: {}]
  %s4 = inlined_call_operand.<no memory space> [shape: f32[1,1], index: 4, kind: input, shape index: {}]
  %s5 = inlined_call_operand.hbm [shape: f32[1,256], index: 5, kind: output, shape index: {}]
  %s6 = sld [smem:[#allocation0]]
  $region30: #{tpu_custom_call.1} parent=0
    _
  %s8 = ssub.s32 1, %s6
  %s9 = scalar_select 0, %s8, %s6
  %v10 = vstv %s4
  %11 = vst [vmem:[#allocation2] sm:$0x1] %v10
  $region1: #{tpu_custom_call.1} parent=0
    #allocation3 [shape = 'u8[1024]{0}', space=vmem, size = 0x400, scoped, tag = 'output window, operand 0, single buffered']
    #allocation4 [shape = 's32[1]{0}', space=sflag, size = 0x4, scoped, tag = 'scoped memory for tpu_custom_call.1']
    %12 = vsyncpa [#allocation4], 0
    // Predicated region
    $region2: #{tpu_custom_call.1} parent=1 // pred_check
      _
    $region3: #{tpu_custom_call.1} parent=1 // pred_check_branch
      %14 = sbr.rel (0) target = $region5
    $region4: #{tpu_custom_call.1} parent=1 // pred_region
      _
    $region5: #{tpu_custom_call.1} parent=1 // pred_fallthru
      _
    // Predicated region
    $region6: #{tpu_custom_call.1} parent=1 // pred_check
      _
    $region7: #{tpu_custom_call.1} parent=1 // pred_check_branch
      %16 = sbr.rel (0) target = $region9
    $region8: #{tpu_custom_call.1} parent=1 // pred_region
      _
    $region9: #{tpu_custom_call.1} parent=1 // pred_fallthru
      _
    // Predicated region
    $region10: #{tpu_custom_call.1} parent=1 // pred_check
      _
    $region11: #{tpu_custom_call.1} parent=1 // pred_check_branch
      %18 = sbr.rel (0) target = $region13
    $region12: #{tpu_custom_call.1} parent=1 // pred_region
      _
    $region13: #{tpu_custom_call.1} parent=1 // pred_fallthru
      _
    // Predicated region
    $region14: #{tpu_custom_call.1} parent=1 // pred_check
      _
    $region15: #{tpu_custom_call.1} parent=1 // pred_check_branch
      %20 = sbr.rel (0) target = $region17
    $region16: #{tpu_custom_call.1} parent=1 // pred_region
      _
    $region17: #{tpu_custom_call.1} parent=1 // pred_fallthru
      _
    // Predicated region
    $region18: #{tpu_custom_call.1} parent=1 // pred_check
      _
    $region19: #{tpu_custom_call.1} parent=1 // pred_check_branch
      %22 = sbr.rel (0) target = $region21
    $region20: #{tpu_custom_call.1} parent=1 // pred_region
      _
    $region21: #{tpu_custom_call.1} parent=1 // pred_fallthru
      _
    %v23 = vld [vmem:[%s0] sm:$0xff]
    %v24 = vld [vmem:[%s0 + $0x8] sm:$0xff]
    %v25 = vld [vmem:[%s0 + $0x10] sm:$0xff]
    %v26 = vld [vmem:[%s0 + $0x18] sm:$0xff]
    %v27 = vld [vmem:[%s0 + $0x20] sm:$0xff]
    %v28 = vld [vmem:[%s0 + $0x28] sm:$0xff]
    %v29 = vld [vmem:[%s0 + $0x30] sm:$0xff]
    %v30 = vld [vmem:[%s0 + $0x38] sm:$0xff]
    %v31 = vld [vmem:[%s0 + $0x40] sm:$0xff]
    %v32 = vld [vmem:[%s0 + $0x48] sm:$0xff]
    %v33 = vld [vmem:[%s0 + $0x50] sm:$0xff]
    %v34 = vld [vmem:[%s0 + $0x58] sm:$0xff]
    %v35 = vld [vmem:[%s0 + $0x60] sm:$0xff]
    %v36 = vld [vmem:[%s0 + $0x68] sm:$0xff]
    %v37 = vld [vmem:[%s0 + $0x70] sm:$0xff]
    %v38 = vld [vmem:[%s0 + $0x78] sm:$0xff]
    %v39 = vld [vmem:[%s0 + $0x80] sm:$0xff]
    %v40 = vld [vmem:[%s0 + $0x88] sm:$0xff]
    %v41 = vld [vmem:[%s0 + $0x90] sm:$0xff]
    %v42 = vld [vmem:[%s0 + $0x98] sm:$0xff]
    %v43 = vld [vmem:[%s0 + $0xa0] sm:$0xff]
    %v44 = vld [vmem:[%s0 + $0xa8] sm:$0xff]
    %v45 = vld [vmem:[%s0 + $0xb0] sm:$0xff]
    %v46 = vld [vmem:[%s0 + $0xb8] sm:$0xff]
    %v47 = vld [vmem:[%s0 + $0xc0] sm:$0xff]
    %v48 = vld [vmem:[%s0 + $0xc8] sm:$0xff]
    %v49 = vld [vmem:[%s0 + $0xd0] sm:$0xff]
    %v50 = vld [vmem:[%s0 + $0xd8] sm:$0xff]
    %v51 = vld [vmem:[%s0 + $0xe0] sm:$0xff]
    %v52 = vld [vmem:[%s0 + $0xe8] sm:$0xff]
    %v53 = vld [vmem:[%s0 + $0xf0] sm:$0xff]
    %v54 = vld [vmem:[%s0 + $0xf8] sm:$0xff]
    %v55 = vld [vmem:[%s1] sm:$0xff]
    %v56 = vld [vmem:[%s2] sm:$0xff]
    %58 = vset.pattern.permute.xlu0 0
    %59 = vperm.xlu0 %58, %v56
    %v60 = vpop.permute.xlu0 %59
    %vm62 = vcmask 15360
    %v64 = vsel %vm62, %v55, 0
    %v67 = vsel %vm62, %v23, 0
    %v70 = vsel %vm62, %v24, 0
    %v73 = vsel %vm62, %v25, 0
    %v76 = vsel %vm62, %v26, 0
    %v79 = vsel %vm62, %v27, 0
    %v82 = vsel %vm62, %v28, 0
    %v85 = vsel %vm62, %v29, 0
    %v88 = vsel %vm62, %v30, 0
    %v91 = vsel %vm62, %v31, 0
    %v94 = vsel %vm62, %v32, 0
    %v97 = vsel %vm62, %v33, 0
    %v100 = vsel %vm62, %v34, 0
    %v103 = vsel %vm62, %v35, 0
    %v106 = vsel %vm62, %v36, 0
    %v109 = vsel %vm62, %v37, 0
    %v112 = vsel %vm62, %v38, 0
    %v115 = vsel %vm62, %v39, 0
    %v118 = vsel %vm62, %v40, 0
    %v121 = vsel %vm62, %v41, 0
    %v124 = vsel %vm62, %v42, 0
    %v127 = vsel %vm62, %v43, 0
    %v130 = vsel %vm62, %v44, 0
    %v133 = vsel %vm62, %v45, 0
    %v136 = vsel %vm62, %v46, 0
    %v139 = vsel %vm62, %v47, 0
    %v142 = vsel %vm62, %v48, 0
    %v145 = vsel %vm62, %v49, 0
    %v148 = vsel %vm62, %v50, 0
    %v151 = vsel %vm62, %v51, 0
    %v154 = vsel %vm62, %v52, 0
    %v157 = vsel %vm62, %v53, 0
    %v160 = vsel %vm62, %v54, 0
    %v162 = vand.u32 %v112, 4294901760
    %163 = vmatpush.xpose.msra.mxu0 %v162
    %v164 = vand.u32 %v109, 4294901760
    %165 = vmatpush.xpose.msra.mxu0 %v164
    %v166 = vand.u32 %v106, 4294901760
    %167 = vmatpush.xpose.msra.mxu0 %v166
    %v168 = vand.u32 %v103, 4294901760
    %169 = vmatpush.xpose.msra.mxu0 %v168
    %v170 = vand.u32 %v100, 4294901760
    %171 = vmatpush.xpose.msra.mxu0 %v170
    %v172 = vand.u32 %v97, 4294901760
    %173 = vmatpush.xpose.msra.mxu0 %v172
    %v174 = vand.u32 %v94, 4294901760
    %175 = vmatpush.xpose.msra.mxu0 %v174
    %v176 = vand.u32 %v91, 4294901760
    %177 = vmatpush.xpose.msra.mxu0 %v176
    %v178 = vand.u32 %v88, 4294901760
    %179 = vmatpush.xpose.msra.mxu0 %v178
    %v180 = vand.u32 %v85, 4294901760
    %181 = vmatpush.xpose.msra.mxu0 %v180
    %v182 = vand.u32 %v82, 4294901760
    %183 = vmatpush.xpose.msra.mxu0 %v182
    %v184 = vand.u32 %v79, 4294901760
    %185 = vmatpush.xpose.msra.mxu0 %v184
    %v186 = vand.u32 %v76, 4294901760
    %187 = vmatpush.xpose.msra.mxu0 %v186
    %v188 = vand.u32 %v73, 4294901760
    %189 = vmatpush.xpose.msra.mxu0 %v188
    %v190 = vand.u32 %v70, 4294901760
    %191 = vmatpush.xpose.msra.mxu0 %v190
    %v192 = vand.u32 %v67, 4294901760
    %193 = vmatpush.xpose.msra.mxu0 %v192
    %v194 = vand.u32 %v64, 4294901760
    %v195 = vsub.f32 %v64, %v194
    %v196 = vand.u32 %v195, 4294901760
    %v197 = vsub.f32 %v195, %v196
    %v198 = vand.u32 %v197, 4294901760
    %199 = vmatmul.f32.gmra.mxu0 %v198
    %v200 = vpop.f32.mrf.mxu0
    %v201 = vadd.f32 %v60, %v200
    %202 = vdwg.mxu0
    %v203 = vand.u32 %v112, 4294901760
    %v204 = vsub.f32 %v112, %v203
    %v205 = vand.u32 %v204, 4294901760
    %v206 = vsub.f32 %v204, %v205
    %v207 = vand.u32 %v206, 4294901760
    %208 = vmatpush.xpose.msra.mxu0 %v207
    %v209 = vand.u32 %v109, 4294901760
    %v210 = vsub.f32 %v109, %v209
    %v211 = vand.u32 %v210, 4294901760
    %v212 = vsub.f32 %v210, %v211
    %v213 = vand.u32 %v212, 4294901760
    %214 = vmatpush.xpose.msra.mxu0 %v213
    %v215 = vand.u32 %v106, 4294901760
    %v216 = vsub.f32 %v106, %v215
    %v217 = vand.u32 %v216, 4294901760
    %v218 = vsub.f32 %v216, %v217
    %v219 = vand.u32 %v218, 4294901760
    %220 = vmatpush.xpose.msra.mxu0 %v219
    %v221 = vand.u32 %v103, 4294901760
    %v222 = vsub.f32 %v103, %v221
    %v223 = vand.u32 %v222, 4294901760
    %v224 = vsub.f32 %v222, %v223
    %v225 = vand.u32 %v224, 4294901760
    %226 = vmatpush.xpose.msra.mxu0 %v225
    %v227 = vand.u32 %v100, 4294901760
    %v228 = vsub.f32 %v100, %v227
    %v229 = vand.u32 %v228, 4294901760
    %v230 = vsub.f32 %v228, %v229
    %v231 = vand.u32 %v230, 4294901760
    %232 = vmatpush.xpose.msra.mxu0 %v231
    %v233 = vand.u32 %v97, 4294901760
    %v234 = vsub.f32 %v97, %v233
    %v235 = vand.u32 %v234, 4294901760
    %v236 = vsub.f32 %v234, %v235
    %v237 = vand.u32 %v236, 4294901760
    %238 = vmatpush.xpose.msra.mxu0 %v237
    %v239 = vand.u32 %v94, 4294901760
    %v240 = vsub.f32 %v94, %v239
    %v241 = vand.u32 %v240, 4294901760
    %v242 = vsub.f32 %v240, %v241
    %v243 = vand.u32 %v242, 4294901760
    %244 = vmatpush.xpose.msra.mxu0 %v243
    %v245 = vand.u32 %v91, 4294901760
    %v246 = vsub.f32 %v91, %v245
    %v247 = vand.u32 %v246, 4294901760
    %v248 = vsub.f32 %v246, %v247
    %v249 = vand.u32 %v248, 4294901760
    %250 = vmatpush.xpose.msra.mxu0 %v249
    %v251 = vand.u32 %v88, 4294901760
    %v252 = vsub.f32 %v88, %v251
    %v253 = vand.u32 %v252, 4294901760
    %v254 = vsub.f32 %v252, %v253
    %v255 = vand.u32 %v254, 4294901760
    %256 = vmatpush.xpose.msra.mxu0 %v255
    %v257 = vand.u32 %v85, 4294901760
    %v258 = vsub.f32 %v85, %v257
    %v259 = vand.u32 %v258, 4294901760
    %v260 = vsub.f32 %v258, %v259
    %v261 = vand.u32 %v260, 4294901760
    %262 = vmatpush.xpose.msra.mxu0 %v261
    %v263 = vand.u32 %v82, 4294901760
    %v264 = vsub.f32 %v82, %v263
    %v265 = vand.u32 %v264, 4294901760
    %v266 = vsub.f32 %v264, %v265
    %v267 = vand.u32 %v266, 4294901760
    %268 = vmatpush.xpose.msra.mxu0 %v267
    %v269 = vand.u32 %v79, 4294901760
    %v270 = vsub.f32 %v79, %v269
    %v271 = vand.u32 %v270, 4294901760
    %v272 = vsub.f32 %v270, %v271
    %v273 = vand.u32 %v272, 4294901760
    %274 = vmatpush.xpose.msra.mxu0 %v273
    %v275 = vand.u32 %v76, 4294901760
    %v276 = vsub.f32 %v76, %v275
    %v277 = vand.u32 %v276, 4294901760
    %v278 = vsub.f32 %v276, %v277
    %v279 = vand.u32 %v278, 4294901760
    %280 = vmatpush.xpose.msra.mxu0 %v279
    %v281 = vand.u32 %v73, 4294901760
    %v282 = vsub.f32 %v73, %v281
    %v283 = vand.u32 %v282, 4294901760
    %v284 = vsub.f32 %v282, %v283
    %v285 = vand.u32 %v284, 4294901760
    %286 = vmatpush.xpose.msra.mxu0 %v285
    %v287 = vand.u32 %v70, 4294901760
    %v288 = vsub.f32 %v70, %v287
    %v289 = vand.u32 %v288, 4294901760
    %v290 = vsub.f32 %v288, %v289
    %v291 = vand.u32 %v290, 4294901760
    %292 = vmatpush.xpose.msra.mxu0 %v291
    %v293 = vand.u32 %v67, 4294901760
    %v294 = vsub.f32 %v67, %v293
    %v295 = vand.u32 %v294, 4294901760
    %v296 = vsub.f32 %v294, %v295
    %v297 = vand.u32 %v296, 4294901760
    %298 = vmatpush.xpose.msra.mxu0 %v297
    %v299 = vand.u32 %v64, 4294901760
    %300 = vmatmul.f32.gmra.mxu0 %v299
    %v301 = vpop.f32.mrf.mxu0
    %v302 = vadd.f32 %v201, %v301
    %303 = vdwg.mxu0
    %v304 = vand.u32 %v112, 4294901760
    %v305 = vsub.f32 %v112, %v304
    %306 = vmatpush.xpose.msra.mxu0 %v305
    %v307 = vand.u32 %v109, 4294901760
    %v308 = vsub.f32 %v109, %v307
    %309 = vmatpush.xpose.msra.mxu0 %v308
    %v310 = vand.u32 %v106, 4294901760
    %v311 = vsub.f32 %v106, %v310
    %312 = vmatpush.xpose.msra.mxu0 %v311
    %v313 = vand.u32 %v103, 4294901760
    %v314 = vsub.f32 %v103, %v313
    %315 = vmatpush.xpose.msra.mxu0 %v314
    %v316 = vand.u32 %v100, 4294901760
    %v317 = vsub.f32 %v100, %v316
    %318 = vmatpush.xpose.msra.mxu0 %v317
    %v319 = vand.u32 %v97, 4294901760
    %v320 = vsub.f32 %v97, %v319
    %321 = vmatpush.xpose.msra.mxu0 %v320
    %v322 = vand.u32 %v94, 4294901760
    %v323 = vsub.f32 %v94, %v322
    %324 = vmatpush.xpose.msra.mxu0 %v323
    %v325 = vand.u32 %v91, 4294901760
    %v326 = vsub.f32 %v91, %v325
    %327 = vmatpush.xpose.msra.mxu0 %v326
    %v328 = vand.u32 %v88, 4294901760
    %v329 = vsub.f32 %v88, %v328
    %330 = vmatpush.xpose.msra.mxu0 %v329
    %v331 = vand.u32 %v85, 4294901760
    %v332 = vsub.f32 %v85, %v331
    %333 = vmatpush.xpose.msra.mxu0 %v332
    %v334 = vand.u32 %v82, 4294901760
    %v335 = vsub.f32 %v82, %v334
    %336 = vmatpush.xpose.msra.mxu0 %v335
    %v337 = vand.u32 %v79, 4294901760
    %v338 = vsub.f32 %v79, %v337
    %339 = vmatpush.xpose.msra.mxu0 %v338
    %v340 = vand.u32 %v76, 4294901760
    %v341 = vsub.f32 %v76, %v340
    %342 = vmatpush.xpose.msra.mxu0 %v341
    %v343 = vand.u32 %v73, 4294901760
    %v344 = vsub.f32 %v73, %v343
    %345 = vmatpush.xpose.msra.mxu0 %v344
    %v346 = vand.u32 %v70, 4294901760
    %v347 = vsub.f32 %v70, %v346
    %348 = vmatpush.xpose.msra.mxu0 %v347
    %v349 = vand.u32 %v67, 4294901760
    %v350 = vsub.f32 %v67, %v349
    %351 = vmatpush.xpose.msra.mxu0 %v350
    %v352 = vand.u32 %v64, 4294901760
    %v353 = vsub.f32 %v64, %v352
    %354 = vmatmul.f32.gmra.mxu0 %v353
    %v355 = vpop.f32.mrf.mxu0
    %v356 = vadd.f32 %v302, %v355
    %357 = vdwg.mxu0
    %v358 = vand.u32 %v112, 4294901760
    %359 = vmatpush.xpose.msra.mxu0 %v358
    %v360 = vand.u32 %v109, 4294901760
    %361 = vmatpush.xpose.msra.mxu0 %v360
    %v362 = vand.u32 %v106, 4294901760
    %363 = vmatpush.xpose.msra.mxu0 %v362
    %v364 = vand.u32 %v103, 4294901760
    %365 = vmatpush.xpose.msra.mxu0 %v364
    %v366 = vand.u32 %v100, 4294901760
    %367 = vmatpush.xpose.msra.mxu0 %v366
    %v368 = vand.u32 %v97, 4294901760
    %369 = vmatpush.xpose.msra.mxu0 %v368
    %v370 = vand.u32 %v94, 4294901760
    %371 = vmatpush.xpose.msra.mxu0 %v370
    %v372 = vand.u32 %v91, 4294901760
    %373 = vmatpush.xpose.msra.mxu0 %v372
    %v374 = vand.u32 %v88, 4294901760
    %375 = vmatpush.xpose.msra.mxu0 %v374
    %v376 = vand.u32 %v85, 4294901760
    %377 = vmatpush.xpose.msra.mxu0 %v376
    %v378 = vand.u32 %v82, 4294901760
    %379 = vmatpush.xpose.msra.mxu0 %v378
    %v380 = vand.u32 %v79, 4294901760
    %381 = vmatpush.xpose.msra.mxu0 %v380
    %v382 = vand.u32 %v76, 4294901760
    %383 = vmatpush.xpose.msra.mxu0 %v382
    %v384 = vand.u32 %v73, 4294901760
    %385 = vmatpush.xpose.msra.mxu0 %v384
    %v386 = vand.u32 %v70, 4294901760
    %387 = vmatpush.xpose.msra.mxu0 %v386
    %v388 = vand.u32 %v67, 4294901760
    %389 = vmatpush.xpose.msra.mxu0 %v388
    %v390 = vand.u32 %v64, 4294901760
    %v391 = vsub.f32 %v64, %v390
    %v392 = vand.u32 %v391, 4294901760
    %393 = vmatmul.f32.gmra.mxu0 %v392
    %v394 = vpop.f32.mrf.mxu0
    %v395 = vadd.f32 %v356, %v394
    %396 = vdwg.mxu0
    %v397 = vand.u32 %v112, 4294901760
    %v398 = vsub.f32 %v112, %v397
    %v399 = vand.u32 %v398, 4294901760
    %400 = vmatpush.xpose.msra.mxu0 %v399
    %v401 = vand.u32 %v109, 4294901760
    %v402 = vsub.f32 %v109, %v401
    %v403 = vand.u32 %v402, 4294901760
    %404 = vmatpush.xpose.msra.mxu0 %v403
    %v405 = vand.u32 %v106, 4294901760
    %v406 = vsub.f32 %v106, %v405
    %v407 = vand.u32 %v406, 4294901760
    %408 = vmatpush.xpose.msra.mxu0 %v407
    %v409 = vand.u32 %v103, 4294901760
    %v410 = vsub.f32 %v103, %v409
    %v411 = vand.u32 %v410, 4294901760
    %412 = vmatpush.xpose.msra.mxu0 %v411
    %v413 = vand.u32 %v100, 4294901760
    %v414 = vsub.f32 %v100, %v413
    %v415 = vand.u32 %v414, 4294901760
    %416 = vmatpush.xpose.msra.mxu0 %v415
    %v417 = vand.u32 %v97, 4294901760
    %v418 = vsub.f32 %v97, %v417
    %v419 = vand.u32 %v418, 4294901760
    %420 = vmatpush.xpose.msra.mxu0 %v419
    %v421 = vand.u32 %v94, 4294901760
    %v422 = vsub.f32 %v94, %v421
    %v423 = vand.u32 %v422, 4294901760
    %424 = vmatpush.xpose.msra.mxu0 %v423
    %v425 = vand.u32 %v91, 4294901760
    %v426 = vsub.f32 %v91, %v425
    %v427 = vand.u32 %v426, 4294901760
    %428 = vmatpush.xpose.msra.mxu0 %v427
    %v429 = vand.u32 %v88, 4294901760
    %v430 = vsub.f32 %v88, %v429
    %v431 = vand.u32 %v430, 4294901760
    %432 = vmatpush.xpose.msra.mxu0 %v431
    %v433 = vand.u32 %v85, 4294901760
    %v434 = vsub.f32 %v85, %v433
    %v435 = vand.u32 %v434, 4294901760
    %436 = vmatpush.xpose.msra.mxu0 %v435
    %v437 = vand.u32 %v82, 4294901760
    %v438 = vsub.f32 %v82, %v437
    %v439 = vand.u32 %v438, 4294901760
    %440 = vmatpush.xpose.msra.mxu0 %v439
    %v441 = vand.u32 %v79, 4294901760
    %v442 = vsub.f32 %v79, %v441
    %v443 = vand.u32 %v442, 4294901760
    %444 = vmatpush.xpose.msra.mxu0 %v443
    %v445 = vand.u32 %v76, 4294901760
    %v446 = vsub.f32 %v76, %v445
    %v447 = vand.u32 %v446, 4294901760
    %448 = vmatpush.xpose.msra.mxu0 %v447
    %v449 = vand.u32 %v73, 4294901760
    %v450 = vsub.f32 %v73, %v449
    %v451 = vand.u32 %v450, 4294901760
    %452 = vmatpush.xpose.msra.mxu0 %v451
    %v453 = vand.u32 %v70, 4294901760
    %v454 = vsub.f32 %v70, %v453
    %v455 = vand.u32 %v454, 4294901760
    %456 = vmatpush.xpose.msra.mxu0 %v455
    %v457 = vand.u32 %v67, 4294901760
    %v458 = vsub.f32 %v67, %v457
    %v459 = vand.u32 %v458, 4294901760
    %460 = vmatpush.xpose.msra.mxu0 %v459
    %v461 = vand.u32 %v64, 4294901760
    %462 = vmatmul.f32.gmra.mxu0 %v461
    %v463 = vpop.f32.mrf.mxu0
    %v464 = vadd.f32 %v395, %v463
    %465 = vdwg.mxu0
    %v466 = vand.u32 %v112, 4294901760
    %467 = vmatpush.xpose.msra.mxu0 %v466
    %v468 = vand.u32 %v109, 4294901760
    %469 = vmatpush.xpose.msra.mxu0 %v468
    %v470 = vand.u32 %v106, 4294901760
    %471 = vmatpush.xpose.msra.mxu0 %v470
    %v472 = vand.u32 %v103, 4294901760
    %473 = vmatpush.xpose.msra.mxu0 %v472
    %v474 = vand.u32 %v100, 4294901760
    %475 = vmatpush.xpose.msra.mxu0 %v474
    %v476 = vand.u32 %v97, 4294901760
    %477 = vmatpush.xpose.msra.mxu0 %v476
    %v478 = vand.u32 %v94, 4294901760
    %479 = vmatpush.xpose.msra.mxu0 %v478
    %v480 = vand.u32 %v91, 4294901760
    %481 = vmatpush.xpose.msra.mxu0 %v480
    %v482 = vand.u32 %v88, 4294901760
    %483 = vmatpush.xpose.msra.mxu0 %v482
    %v484 = vand.u32 %v85, 4294901760
    %485 = vmatpush.xpose.msra.mxu0 %v484
    %v486 = vand.u32 %v82, 4294901760
    %487 = vmatpush.xpose.msra.mxu0 %v486
    %v488 = vand.u32 %v79, 4294901760
    %489 = vmatpush.xpose.msra.mxu0 %v488
    %v490 = vand.u32 %v76, 4294901760
    %491 = vmatpush.xpose.msra.mxu0 %v490
    %v492 = vand.u32 %v73, 4294901760
    %493 = vmatpush.xpose.msra.mxu0 %v492
    %v494 = vand.u32 %v70, 4294901760
    %495 = vmatpush.xpose.msra.mxu0 %v494
    %v496 = vand.u32 %v67, 4294901760
    %497 = vmatpush.xpose.msra.mxu0 %v496
    %v498 = vand.u32 %v64, 4294901760
    %499 = vmatmul.f32.gmra.mxu0 %v498
    %v500 = vpop.f32.mrf.mxu0
    %v501 = vadd.f32 %v464, %v500
    %502 = vdwg.mxu0
    %v503 = vand.u32 %v160, 4294901760
    %504 = vmatpush.xpose.msra.mxu0 %v503
    %v505 = vand.u32 %v157, 4294901760
    %506 = vmatpush.xpose.msra.mxu0 %v505
    %v507 = vand.u32 %v154, 4294901760
    %508 = vmatpush.xpose.msra.mxu0 %v507
    %v509 = vand.u32 %v151, 4294901760
    %510 = vmatpush.xpose.msra.mxu0 %v509
    %v511 = vand.u32 %v148, 4294901760
    %512 = vmatpush.xpose.msra.mxu0 %v511
    %v513 = vand.u32 %v145, 4294901760
    %514 = vmatpush.xpose.msra.mxu0 %v513
    %v515 = vand.u32 %v142, 4294901760
    %516 = vmatpush.xpose.msra.mxu0 %v515
    %v517 = vand.u32 %v139, 4294901760
    %518 = vmatpush.xpose.msra.mxu0 %v517
    %v519 = vand.u32 %v136, 4294901760
    %520 = vmatpush.xpose.msra.mxu0 %v519
    %v521 = vand.u32 %v133, 4294901760
    %522 = vmatpush.xpose.msra.mxu0 %v521
    %v523 = vand.u32 %v130, 4294901760
    %524 = vmatpush.xpose.msra.mxu0 %v523
    %v525 = vand.u32 %v127, 4294901760
    %526 = vmatpush.xpose.msra.mxu0 %v525
    %v527 = vand.u32 %v124, 4294901760
    %528 = vmatpush.xpose.msra.mxu0 %v527
    %v529 = vand.u32 %v121, 4294901760
    %530 = vmatpush.xpose.msra.mxu0 %v529
    %v531 = vand.u32 %v118, 4294901760
    %532 = vmatpush.xpose.msra.mxu0 %v531
    %v533 = vand.u32 %v115, 4294901760
    %534 = vmatpush.xpose.msra.mxu0 %v533
    %v535 = vand.u32 %v64, 4294901760
    %v536 = vsub.f32 %v64, %v535
    %v537 = vand.u32 %v536, 4294901760
    %v538 = vsub.f32 %v536, %v537
    %v539 = vand.u32 %v538, 4294901760
    %540 = vmatmul.f32.gmra.mxu0 %v539
    %v541 = vpop.f32.mrf.mxu0
    %v542 = vadd.f32 %v60, %v541
    %543 = vdwg.mxu0
    %v544 = vand.u32 %v160, 4294901760
    %v545 = vsub.f32 %v160, %v544
    %v546 = vand.u32 %v545, 4294901760
    %v547 = vsub.f32 %v545, %v546
    %v548 = vand.u32 %v547, 4294901760
    %549 = vmatpush.xpose.msra.mxu0 %v548
    %v550 = vand.u32 %v157, 4294901760
    %v551 = vsub.f32 %v157, %v550
    %v552 = vand.u32 %v551, 4294901760
    %v553 = vsub.f32 %v551, %v552
    %v554 = vand.u32 %v553, 4294901760
    %555 = vmatpush.xpose.msra.mxu0 %v554
    %v556 = vand.u32 %v154, 4294901760
    %v557 = vsub.f32 %v154, %v556
    %v558 = vand.u32 %v557, 4294901760
    %v559 = vsub.f32 %v557, %v558
    %v560 = vand.u32 %v559, 4294901760
    %561 = vmatpush.xpose.msra.mxu0 %v560
    %v562 = vand.u32 %v151, 4294901760
    %v563 = vsub.f32 %v151, %v562
    %v564 = vand.u32 %v563, 4294901760
    %v565 = vsub.f32 %v563, %v564
    %v566 = vand.u32 %v565, 4294901760
    %567 = vmatpush.xpose.msra.mxu0 %v566
    %v568 = vand.u32 %v148, 4294901760
    %v569 = vsub.f32 %v148, %v568
    %v570 = vand.u32 %v569, 4294901760
    %v571 = vsub.f32 %v569, %v570
    %v572 = vand.u32 %v571, 4294901760
    %573 = vmatpush.xpose.msra.mxu0 %v572
    %v574 = vand.u32 %v145, 4294901760
    %v575 = vsub.f32 %v145, %v574
    %v576 = vand.u32 %v575, 4294901760
    %v577 = vsub.f32 %v575, %v576
    %v578 = vand.u32 %v577, 4294901760
    %579 = vmatpush.xpose.msra.mxu0 %v578
    %v580 = vand.u32 %v142, 4294901760
    %v581 = vsub.f32 %v142, %v580
    %v582 = vand.u32 %v581, 4294901760
    %v583 = vsub.f32 %v581, %v582
    %v584 = vand.u32 %v583, 4294901760
    %585 = vmatpush.xpose.msra.mxu0 %v584
    %v586 = vand.u32 %v139, 4294901760
    %v587 = vsub.f32 %v139, %v586
    %v588 = vand.u32 %v587, 4294901760
    %v589 = vsub.f32 %v587, %v588
    %v590 = vand.u32 %v589, 4294901760
    %591 = vmatpush.xpose.msra.mxu0 %v590
    %v592 = vand.u32 %v136, 4294901760
    %v593 = vsub.f32 %v136, %v592
    %v594 = vand.u32 %v593, 4294901760
    %v595 = vsub.f32 %v593, %v594
    %v596 = vand.u32 %v595, 4294901760
    %597 = vmatpush.xpose.msra.mxu0 %v596
    %v598 = vand.u32 %v133, 4294901760
    %v599 = vsub.f32 %v133, %v598
    %v600 = vand.u32 %v599, 4294901760
    %v601 = vsub.f32 %v599, %v600
    %v602 = vand.u32 %v601, 4294901760
    %603 = vmatpush.xpose.msra.mxu0 %v602
    %v604 = vand.u32 %v130, 4294901760
    %v605 = vsub.f32 %v130, %v604
    %v606 = vand.u32 %v605, 4294901760
    %v607 = vsub.f32 %v605, %v606
    %v608 = vand.u32 %v607, 4294901760
    %609 = vmatpush.xpose.msra.mxu0 %v608
    %v610 = vand.u32 %v127, 4294901760
    %v611 = vsub.f32 %v127, %v610
    %v612 = vand.u32 %v611, 4294901760
    %v613 = vsub.f32 %v611, %v612
    %v614 = vand.u32 %v613, 4294901760
    %615 = vmatpush.xpose.msra.mxu0 %v614
    %v616 = vand.u32 %v124, 4294901760
    %v617 = vsub.f32 %v124, %v616
    %v618 = vand.u32 %v617, 4294901760
    %v619 = vsub.f32 %v617, %v618
    %v620 = vand.u32 %v619, 4294901760
    %621 = vmatpush.xpose.msra.mxu0 %v620
    %v622 = vand.u32 %v121, 4294901760
    %v623 = vsub.f32 %v121, %v622
    %v624 = vand.u32 %v623, 4294901760
    %v625 = vsub.f32 %v623, %v624
    %v626 = vand.u32 %v625, 4294901760
    %627 = vmatpush.xpose.msra.mxu0 %v626
    %v628 = vand.u32 %v118, 4294901760
    %v629 = vsub.f32 %v118, %v628
    %v630 = vand.u32 %v629, 4294901760
    %v631 = vsub.f32 %v629, %v630
    %v632 = vand.u32 %v631, 4294901760
    %633 = vmatpush.xpose.msra.mxu0 %v632
    %v634 = vand.u32 %v115, 4294901760
    %v635 = vsub.f32 %v115, %v634
    %v636 = vand.u32 %v635, 4294901760
    %v637 = vsub.f32 %v635, %v636
    %v638 = vand.u32 %v637, 4294901760
    %639 = vmatpush.xpose.msra.mxu0 %v638
    %v640 = vand.u32 %v64, 4294901760
    %641 = vmatmul.f32.gmra.mxu0 %v640
    %v642 = vpop.f32.mrf.mxu0
    %v643 = vadd.f32 %v542, %v642
    %644 = vdwg.mxu0
    %v645 = vand.u32 %v160, 4294901760
    %v646 = vsub.f32 %v160, %v645
    %647 = vmatpush.xpose.msra.mxu0 %v646
    %v648 = vand.u32 %v157, 4294901760
    %v649 = vsub.f32 %v157, %v648
    %650 = vmatpush.xpose.msra.mxu0 %v649
    %v651 = vand.u32 %v154, 4294901760
    %v652 = vsub.f32 %v154, %v651
    %653 = vmatpush.xpose.msra.mxu0 %v652
    %v654 = vand.u32 %v151, 4294901760
    %v655 = vsub.f32 %v151, %v654
    %656 = vmatpush.xpose.msra.mxu0 %v655
    %v657 = vand.u32 %v148, 4294901760
    %v658 = vsub.f32 %v148, %v657
    %659 = vmatpush.xpose.msra.mxu0 %v658
    %v660 = vand.u32 %v145, 4294901760
    %v661 = vsub.f32 %v145, %v660
    %662 = vmatpush.xpose.msra.mxu0 %v661
    %v663 = vand.u32 %v142, 4294901760
    %v664 = vsub.f32 %v142, %v663
    %665 = vmatpush.xpose.msra.mxu0 %v664
    %v666 = vand.u32 %v139, 4294901760
    %v667 = vsub.f32 %v139, %v666
    %668 = vmatpush.xpose.msra.mxu0 %v667
    %v669 = vand.u32 %v136, 4294901760
    %v670 = vsub.f32 %v136, %v669
    %671 = vmatpush.xpose.msra.mxu0 %v670
    %v672 = vand.u32 %v133, 4294901760
    %v673 = vsub.f32 %v133, %v672
    %674 = vmatpush.xpose.msra.mxu0 %v673
    %v675 = vand.u32 %v130, 4294901760
    %v676 = vsub.f32 %v130, %v675
    %677 = vmatpush.xpose.msra.mxu0 %v676
    %v678 = vand.u32 %v127, 4294901760
    %v679 = vsub.f32 %v127, %v678
    %680 = vmatpush.xpose.msra.mxu0 %v679
    %v681 = vand.u32 %v124, 4294901760
    %v682 = vsub.f32 %v124, %v681
    %683 = vmatpush.xpose.msra.mxu0 %v682
    %v684 = vand.u32 %v121, 4294901760
    %v685 = vsub.f32 %v121, %v684
    %686 = vmatpush.xpose.msra.mxu0 %v685
    %v687 = vand.u32 %v118, 4294901760
    %v688 = vsub.f32 %v118, %v687
    %689 = vmatpush.xpose.msra.mxu0 %v688
    %v690 = vand.u32 %v115, 4294901760
    %v691 = vsub.f32 %v115, %v690
    %692 = vmatpush.xpose.msra.mxu0 %v691
    %v693 = vand.u32 %v64, 4294901760
    %v694 = vsub.f32 %v64, %v693
    %695 = vmatmul.f32.gmra.mxu0 %v694
    %v696 = vpop.f32.mrf.mxu0
    %v697 = vadd.f32 %v643, %v696
    %698 = vdwg.mxu0
    %v699 = vand.u32 %v160, 4294901760
    %700 = vmatpush.xpose.msra.mxu0 %v699
    %v701 = vand.u32 %v157, 4294901760
    %702 = vmatpush.xpose.msra.mxu0 %v701
    %v703 = vand.u32 %v154, 4294901760
    %704 = vmatpush.xpose.msra.mxu0 %v703
    %v705 = vand.u32 %v151, 4294901760
    %706 = vmatpush.xpose.msra.mxu0 %v705
    %v707 = vand.u32 %v148, 4294901760
    %708 = vmatpush.xpose.msra.mxu0 %v707
    %v709 = vand.u32 %v145, 4294901760
    %710 = vmatpush.xpose.msra.mxu0 %v709
    %v711 = vand.u32 %v142, 4294901760
    %712 = vmatpush.xpose.msra.mxu0 %v711
    %v713 = vand.u32 %v139, 4294901760
    %714 = vmatpush.xpose.msra.mxu0 %v713
    %v715 = vand.u32 %v136, 4294901760
    %716 = vmatpush.xpose.msra.mxu0 %v715
    %v717 = vand.u32 %v133, 4294901760
    %718 = vmatpush.xpose.msra.mxu0 %v717
    %v719 = vand.u32 %v130, 4294901760
    %720 = vmatpush.xpose.msra.mxu0 %v719
    %v721 = vand.u32 %v127, 4294901760
    %722 = vmatpush.xpose.msra.mxu0 %v721
    %v723 = vand.u32 %v124, 4294901760
    %724 = vmatpush.xpose.msra.mxu0 %v723
    %v725 = vand.u32 %v121, 4294901760
    %726 = vmatpush.xpose.msra.mxu0 %v725
    %v727 = vand.u32 %v118, 4294901760
    %728 = vmatpush.xpose.msra.mxu0 %v727
    %v729 = vand.u32 %v115, 4294901760
    %730 = vmatpush.xpose.msra.mxu0 %v729
    %v731 = vand.u32 %v64, 4294901760
    %v732 = vsub.f32 %v64, %v731
    %v733 = vand.u32 %v732, 4294901760
    %734 = vmatmul.f32.gmra.mxu0 %v733
    %v735 = vpop.f32.mrf.mxu0
    %v736 = vadd.f32 %v697, %v735
    %737 = vdwg.mxu0
    %v738 = vand.u32 %v160, 4294901760
    %v739 = vsub.f32 %v160, %v738
    %v740 = vand.u32 %v739, 4294901760
    %741 = vmatpush.xpose.msra.mxu0 %v740
    %v742 = vand.u32 %v157, 4294901760
    %v743 = vsub.f32 %v157, %v742
    %v744 = vand.u32 %v743, 4294901760
    %745 = vmatpush.xpose.msra.mxu0 %v744
    %v746 = vand.u32 %v154, 4294901760
    %v747 = vsub.f32 %v154, %v746
    %v748 = vand.u32 %v747, 4294901760
    %749 = vmatpush.xpose.msra.mxu0 %v748
    %v750 = vand.u32 %v151, 4294901760
    %v751 = vsub.f32 %v151, %v750
    %v752 = vand.u32 %v751, 4294901760
    %753 = vmatpush.xpose.msra.mxu0 %v752
    %v754 = vand.u32 %v148, 4294901760
    %v755 = vsub.f32 %v148, %v754
    %v756 = vand.u32 %v755, 4294901760
    %757 = vmatpush.xpose.msra.mxu0 %v756
    %v758 = vand.u32 %v145, 4294901760
    %v759 = vsub.f32 %v145, %v758
    %v760 = vand.u32 %v759, 4294901760
    %761 = vmatpush.xpose.msra.mxu0 %v760
    %v762 = vand.u32 %v142, 4294901760
    %v763 = vsub.f32 %v142, %v762
    %v764 = vand.u32 %v763, 4294901760
    %765 = vmatpush.xpose.msra.mxu0 %v764
    %v766 = vand.u32 %v139, 4294901760
    %v767 = vsub.f32 %v139, %v766
    %v768 = vand.u32 %v767, 4294901760
    %769 = vmatpush.xpose.msra.mxu0 %v768
    %v770 = vand.u32 %v136, 4294901760
    %v771 = vsub.f32 %v136, %v770
    %v772 = vand.u32 %v771, 4294901760
    %773 = vmatpush.xpose.msra.mxu0 %v772
    %v774 = vand.u32 %v133, 4294901760
    %v775 = vsub.f32 %v133, %v774
    %v776 = vand.u32 %v775, 4294901760
    %777 = vmatpush.xpose.msra.mxu0 %v776
    %v778 = vand.u32 %v130, 4294901760
    %v779 = vsub.f32 %v130, %v778
    %v780 = vand.u32 %v779, 4294901760
    %781 = vmatpush.xpose.msra.mxu0 %v780
    %v782 = vand.u32 %v127, 4294901760
    %v783 = vsub.f32 %v127, %v782
    %v784 = vand.u32 %v783, 4294901760
    %785 = vmatpush.xpose.msra.mxu0 %v784
    %v786 = vand.u32 %v124, 4294901760
    %v787 = vsub.f32 %v124, %v786
    %v788 = vand.u32 %v787, 4294901760
    %789 = vmatpush.xpose.msra.mxu0 %v788
    %v790 = vand.u32 %v121, 4294901760
    %v791 = vsub.f32 %v121, %v790
    %v792 = vand.u32 %v791, 4294901760
    %793 = vmatpush.xpose.msra.mxu0 %v792
    %v794 = vand.u32 %v118, 4294901760
    %v795 = vsub.f32 %v118, %v794
    %v796 = vand.u32 %v795, 4294901760
    %797 = vmatpush.xpose.msra.mxu0 %v796
    %v798 = vand.u32 %v115, 4294901760
    %v799 = vsub.f32 %v115, %v798
    %v800 = vand.u32 %v799, 4294901760
    %801 = vmatpush.xpose.msra.mxu0 %v800
    %v802 = vand.u32 %v64, 4294901760
    %803 = vmatmul.f32.gmra.mxu0 %v802
    %v804 = vpop.f32.mrf.mxu0
    %v805 = vadd.f32 %v736, %v804
    %806 = vdwg.mxu0
    %v807 = vand.u32 %v160, 4294901760
    %808 = vmatpush.xpose.msra.mxu0 %v807
    %v809 = vand.u32 %v157, 4294901760
    %810 = vmatpush.xpose.msra.mxu0 %v809
    %v811 = vand.u32 %v154, 4294901760
    %812 = vmatpush.xpose.msra.mxu0 %v811
    %v813 = vand.u32 %v151, 4294901760
    %814 = vmatpush.xpose.msra.mxu0 %v813
    %v815 = vand.u32 %v148, 4294901760
    %816 = vmatpush.xpose.msra.mxu0 %v815
    %v817 = vand.u32 %v145, 4294901760
    %818 = vmatpush.xpose.msra.mxu0 %v817
    %v819 = vand.u32 %v142, 4294901760
    %820 = vmatpush.xpose.msra.mxu0 %v819
    %v821 = vand.u32 %v139, 4294901760
    %822 = vmatpush.xpose.msra.mxu0 %v821
    %v823 = vand.u32 %v136, 4294901760
    %824 = vmatpush.xpose.msra.mxu0 %v823
    %v825 = vand.u32 %v133, 4294901760
    %826 = vmatpush.xpose.msra.mxu0 %v825
    %v827 = vand.u32 %v130, 4294901760
    %828 = vmatpush.xpose.msra.mxu0 %v827
    %v829 = vand.u32 %v127, 4294901760
    %830 = vmatpush.xpose.msra.mxu0 %v829
    %v831 = vand.u32 %v124, 4294901760
    %832 = vmatpush.xpose.msra.mxu0 %v831
    %v833 = vand.u32 %v121, 4294901760
    %834 = vmatpush.xpose.msra.mxu0 %v833
    %v835 = vand.u32 %v118, 4294901760
    %836 = vmatpush.xpose.msra.mxu0 %v835
    %v837 = vand.u32 %v115, 4294901760
    %838 = vmatpush.xpose.msra.mxu0 %v837
    %v839 = vand.u32 %v64, 4294901760
    %840 = vmatmul.f32.gmra.mxu0 %v839
    %v841 = vpop.f32.mrf.mxu0
    %v842 = vadd.f32 %v805, %v841
    %843 = vdwg.mxu0
    %v844 = vtanh.pop %v501
    %v845 = vtanh.pop %v842
    %v846 = vld [vmem:[%s3] sm:$0x1]
    %v847 = vld [vmem:[#allocation2] sm:$0x1]
    %849 = vset.pattern.permute.xlu0 0
    %850 = vperm.xlu0 %849, %v847
    %v851 = vpop.permute.xlu0 %850
    %v853 = vperm.slane %v851, 0
    %vm854 = vcmask 64512
    %v856 = vsel %vm854, %v846, 0
    %858 = vmatpush.msra.mxu0 0.0
    %859 = vmatpush.msra.mxu0 0.0
    %860 = vmatpush.msra.mxu0 0.0
    %861 = vmatpush.msra.mxu0 0.0
    %862 = vmatpush.msra.mxu0 0.0
    %863 = vmatpush.msra.mxu0 0.0
    %864 = vmatpush.msra.mxu0 0.0
    %865 = vmatpush.msra.mxu0 0.0
    %866 = vmatpush.msra.mxu0 0.0
    %867 = vmatpush.msra.mxu0 0.0
    %868 = vmatpush.msra.mxu0 0.0
    %869 = vmatpush.msra.mxu0 0.0
    %870 = vmatpush.msra.mxu0 0.0
    %871 = vmatpush.msra.mxu0 0.0
    %872 = vmatpush.msra.mxu0 0.0
    %v873 = vand.u32 %v844, 4294901760
    %874 = vmatpush.msra.mxu0 %v873
    %v875 = vand.u32 %v856, 4294901760
    %v876 = vsub.f32 %v856, %v875
    %v877 = vand.u32 %v876, 4294901760
    %v878 = vsub.f32 %v876, %v877
    %v879 = vand.u32 %v878, 4294901760
    %880 = vmatmul.f32.gmra.mxu0 %v879
    %v881 = vpop.f32.mrf.mxu0
    %v882 = vadd.f32 %v853, %v881
    %883 = vdwg.mxu0
    %884 = vmatpush.msra.mxu0 0.0
    %885 = vmatpush.msra.mxu0 0.0
    %886 = vmatpush.msra.mxu0 0.0
    %887 = vmatpush.msra.mxu0 0.0
    %888 = vmatpush.msra.mxu0 0.0
    %889 = vmatpush.msra.mxu0 0.0
    %890 = vmatpush.msra.mxu0 0.0
    %891 = vmatpush.msra.mxu0 0.0
    %892 = vmatpush.msra.mxu0 0.0
    %893 = vmatpush.msra.mxu0 0.0
    %894 = vmatpush.msra.mxu0 0.0
    %895 = vmatpush.msra.mxu0 0.0
    %896 = vmatpush.msra.mxu0 0.0
    %897 = vmatpush.msra.mxu0 0.0
    %898 = vmatpush.msra.mxu0 0.0
    %v899 = vand.u32 %v844, 4294901760
    %v900 = vsub.f32 %v844, %v899
    %v901 = vand.u32 %v900, 4294901760
    %v902 = vsub.f32 %v900, %v901
    %v903 = vand.u32 %v902, 4294901760
    %904 = vmatpush.msra.mxu0 %v903
    %v905 = vand.u32 %v856, 4294901760
    %906 = vmatmul.f32.gmra.mxu0 %v905
    %v907 = vpop.f32.mrf.mxu0
    %v908 = vadd.f32 %v882, %v907
    %909 = vdwg.mxu0
    %910 = vmatpush.msra.mxu0 0.0
    %911 = vmatpush.msra.mxu0 0.0
    %912 = vmatpush.msra.mxu0 0.0
    %913 = vmatpush.msra.mxu0 0.0
    %914 = vmatpush.msra.mxu0 0.0
    %915 = vmatpush.msra.mxu0 0.0
    %916 = vmatpush.msra.mxu0 0.0
    %917 = vmatpush.msra.mxu0 0.0
    %918 = vmatpush.msra.mxu0 0.0
    %919 = vmatpush.msra.mxu0 0.0
    %920 = vmatpush.msra.mxu0 0.0
    %921 = vmatpush.msra.mxu0 0.0
    %922 = vmatpush.msra.mxu0 0.0
    %923 = vmatpush.msra.mxu0 0.0
    %924 = vmatpush.msra.mxu0 0.0
    %v925 = vand.u32 %v844, 4294901760
    %v926 = vsub.f32 %v844, %v925
    %927 = vmatpush.msra.mxu0 %v926
    %v928 = vand.u32 %v856, 4294901760
    %v929 = vsub.f32 %v856, %v928
    %930 = vmatmul.f32.gmra.mxu0 %v929
    %v931 = vpop.f32.mrf.mxu0
    %v932 = vadd.f32 %v908, %v931
    %933 = vdwg.mxu0
    %934 = vmatpush.msra.mxu0 0.0
    %935 = vmatpush.msra.mxu0 0.0
    %936 = vmatpush.msra.mxu0 0.0
    %937 = vmatpush.msra.mxu0 0.0
    %938 = vmatpush.msra.mxu0 0.0
    %939 = vmatpush.msra.mxu0 0.0
    %940 = vmatpush.msra.mxu0 0.0
    %941 = vmatpush.msra.mxu0 0.0
    %942 = vmatpush.msra.mxu0 0.0
    %943 = vmatpush.msra.mxu0 0.0
    %944 = vmatpush.msra.mxu0 0.0
    %945 = vmatpush.msra.mxu0 0.0
    %946 = vmatpush.msra.mxu0 0.0
    %947 = vmatpush.msra.mxu0 0.0
    %948 = vmatpush.msra.mxu0 0.0
    %v949 = vand.u32 %v844, 4294901760
    %950 = vmatpush.msra.mxu0 %v949
    %v951 = vand.u32 %v856, 4294901760
    %v952 = vsub.f32 %v856, %v951
    %v953 = vand.u32 %v952, 4294901760
    %954 = vmatmul.f32.gmra.mxu0 %v953
    %v955 = vpop.f32.mrf.mxu0
    %v956 = vadd.f32 %v932, %v955
    %957 = vdwg.mxu0
    %958 = vmatpush.msra.mxu0 0.0
    %959 = vmatpush.msra.mxu0 0.0
    %960 = vmatpush.msra.mxu0 0.0
    %961 = vmatpush.msra.mxu0 0.0
    %962 = vmatpush.msra.mxu0 0.0
    %963 = vmatpush.msra.mxu0 0.0
    %964 = vmatpush.msra.mxu0 0.0
    %965 = vmatpush.msra.mxu0 0.0
    %966 = vmatpush.msra.mxu0 0.0
    %967 = vmatpush.msra.mxu0 0.0
    %968 = vmatpush.msra.mxu0 0.0
    %969 = vmatpush.msra.mxu0 0.0
    %970 = vmatpush.msra.mxu0 0.0
    %971 = vmatpush.msra.mxu0 0.0
    %972 = vmatpush.msra.mxu0 0.0
    %v973 = vand.u32 %v844, 4294901760
    %v974 = vsub.f32 %v844, %v973
    %v975 = vand.u32 %v974, 4294901760
    %976 = vmatpush.msra.mxu0 %v975
    %v977 = vand.u32 %v856, 4294901760
    %978 = vmatmul.f32.gmra.mxu0 %v977
    %v979 = vpop.f32.mrf.mxu0
    %v980 = vadd.f32 %v956, %v979
    %981 = vdwg.mxu0
    %982 = vmatpush.msra.mxu0 0.0
    %983 = vmatpush.msra.mxu0 0.0
    %984 = vmatpush.msra.mxu0 0.0
    %985 = vmatpush.msra.mxu0 0.0
    %986 = vmatpush.msra.mxu0 0.0
    %987 = vmatpush.msra.mxu0 0.0
    %988 = vmatpush.msra.mxu0 0.0
    %989 = vmatpush.msra.mxu0 0.0
    %990 = vmatpush.msra.mxu0 0.0
    %991 = vmatpush.msra.mxu0 0.0
    %992 = vmatpush.msra.mxu0 0.0
    %993 = vmatpush.msra.mxu0 0.0
    %994 = vmatpush.msra.mxu0 0.0
    %995 = vmatpush.msra.mxu0 0.0
    %996 = vmatpush.msra.mxu0 0.0
    %v997 = vand.u32 %v844, 4294901760
    %998 = vmatpush.msra.mxu0 %v997
    %v999 = vand.u32 %v856, 4294901760
    %1000 = vmatmul.f32.gmra.mxu0 %v999
    %v1001 = vpop.f32.mrf.mxu0
    %v1002 = vadd.f32 %v980, %v1001
    %1003 = vdwg.mxu0
    %1004 = vmatpush.msra.mxu0 0.0
    %1005 = vmatpush.msra.mxu0 0.0
    %1006 = vmatpush.msra.mxu0 0.0
    %1007 = vmatpush.msra.mxu0 0.0
    %1008 = vmatpush.msra.mxu0 0.0
    %1009 = vmatpush.msra.mxu0 0.0
    %1010 = vmatpush.msra.mxu0 0.0
    %1011 = vmatpush.msra.mxu0 0.0
    %1012 = vmatpush.msra.mxu0 0.0
    %1013 = vmatpush.msra.mxu0 0.0
    %1014 = vmatpush.msra.mxu0 0.0
    %1015 = vmatpush.msra.mxu0 0.0
    %1016 = vmatpush.msra.mxu0 0.0
    %1017 = vmatpush.msra.mxu0 0.0
    %1018 = vmatpush.msra.mxu0 0.0
    %v1019 = vand.u32 %v845, 4294901760
    %1020 = vmatpush.msra.mxu0 %v1019
    %v1021 = vand.u32 %v856, 4294901760
    %v1022 = vsub.f32 %v856, %v1021
    %v1023 = vand.u32 %v1022, 4294901760
    %v1024 = vsub.f32 %v1022, %v1023
    %v1025 = vand.u32 %v1024, 4294901760
    %1026 = vmatmul.f32.gmra.mxu0 %v1025
    %v1027 = vpop.f32.mrf.mxu0
    %v1028 = vadd.f32 %v853, %v1027
    %1029 = vdwg.mxu0
    %1030 = vmatpush.msra.mxu0 0.0
    %1031 = vmatpush.msra.mxu0 0.0
    %1032 = vmatpush.msra.mxu0 0.0
    %1033 = vmatpush.msra.mxu0 0.0
    %1034 = vmatpush.msra.mxu0 0.0
    %1035 = vmatpush.msra.mxu0 0.0
    %1036 = vmatpush.msra.mxu0 0.0
    %1037 = vmatpush.msra.mxu0 0.0
    %1038 = vmatpush.msra.mxu0 0.0
    %1039 = vmatpush.msra.mxu0 0.0
    %1040 = vmatpush.msra.mxu0 0.0
    %1041 = vmatpush.msra.mxu0 0.0
    %1042 = vmatpush.msra.mxu0 0.0
    %1043 = vmatpush.msra.mxu0 0.0
    %1044 = vmatpush.msra.mxu0 0.0
    %v1045 = vand.u32 %v845, 4294901760
    %v1046 = vsub.f32 %v845, %v1045
    %v1047 = vand.u32 %v1046, 4294901760
    %v1048 = vsub.f32 %v1046, %v1047
    %v1049 = vand.u32 %v1048, 4294901760
    %1050 = vmatpush.msra.mxu0 %v1049
    %v1051 = vand.u32 %v856, 4294901760
    %1052 = vmatmul.f32.gmra.mxu0 %v1051
    %v1053 = vpop.f32.mrf.mxu0
    %v1054 = vadd.f32 %v1028, %v1053
    %1055 = vdwg.mxu0
    %1056 = vmatpush.msra.mxu0 0.0
    %1057 = vmatpush.msra.mxu0 0.0
    %1058 = vmatpush.msra.mxu0 0.0
    %1059 = vmatpush.msra.mxu0 0.0
    %1060 = vmatpush.msra.mxu0 0.0
    %1061 = vmatpush.msra.mxu0 0.0
    %1062 = vmatpush.msra.mxu0 0.0
    %1063 = vmatpush.msra.mxu0 0.0
    %1064 = vmatpush.msra.mxu0 0.0
    %1065 = vmatpush.msra.mxu0 0.0
    %1066 = vmatpush.msra.mxu0 0.0
    %1067 = vmatpush.msra.mxu0 0.0
    %1068 = vmatpush.msra.mxu0 0.0
    %1069 = vmatpush.msra.mxu0 0.0
    %1070 = vmatpush.msra.mxu0 0.0
    %v1071 = vand.u32 %v845, 4294901760
    %v1072 = vsub.f32 %v845, %v1071
    %1073 = vmatpush.msra.mxu0 %v1072
    %v1074 = vand.u32 %v856, 4294901760
    %v1075 = vsub.f32 %v856, %v1074
    %1076 = vmatmul.f32.gmra.mxu0 %v1075
    %v1077 = vpop.f32.mrf.mxu0
    %v1078 = vadd.f32 %v1054, %v1077
    %1079 = vdwg.mxu0
    %1080 = vmatpush.msra.mxu0 0.0
    %1081 = vmatpush.msra.mxu0 0.0
    %1082 = vmatpush.msra.mxu0 0.0
    %1083 = vmatpush.msra.mxu0 0.0
    %1084 = vmatpush.msra.mxu0 0.0
    %1085 = vmatpush.msra.mxu0 0.0
    %1086 = vmatpush.msra.mxu0 0.0
    %1087 = vmatpush.msra.mxu0 0.0
    %1088 = vmatpush.msra.mxu0 0.0
    %1089 = vmatpush.msra.mxu0 0.0
    %1090 = vmatpush.msra.mxu0 0.0
    %1091 = vmatpush.msra.mxu0 0.0
    %1092 = vmatpush.msra.mxu0 0.0
    %1093 = vmatpush.msra.mxu0 0.0
    %1094 = vmatpush.msra.mxu0 0.0
    %v1095 = vand.u32 %v845, 4294901760
    %1096 = vmatpush.msra.mxu0 %v1095
    %v1097 = vand.u32 %v856, 4294901760
    %v1098 = vsub.f32 %v856, %v1097
    %v1099 = vand.u32 %v1098, 4294901760
    %1100 = vmatmul.f32.gmra.mxu0 %v1099
    %v1101 = vpop.f32.mrf.mxu0
    %v1102 = vadd.f32 %v1078, %v1101
    %1103 = vdwg.mxu0
    %1104 = vmatpush.msra.mxu0 0.0
    %1105 = vmatpush.msra.mxu0 0.0
    %1106 = vmatpush.msra.mxu0 0.0
    %1107 = vmatpush.msra.mxu0 0.0
    %1108 = vmatpush.msra.mxu0 0.0
    %1109 = vmatpush.msra.mxu0 0.0
    %1110 = vmatpush.msra.mxu0 0.0
    %1111 = vmatpush.msra.mxu0 0.0
    %1112 = vmatpush.msra.mxu0 0.0
    %1113 = vmatpush.msra.mxu0 0.0
    %1114 = vmatpush.msra.mxu0 0.0
    %1115 = vmatpush.msra.mxu0 0.0
    %1116 = vmatpush.msra.mxu0 0.0
    %1117 = vmatpush.msra.mxu0 0.0
    %1118 = vmatpush.msra.mxu0 0.0
    %v1119 = vand.u32 %v845, 4294901760
    %v1120 = vsub.f32 %v845, %v1119
    %v1121 = vand.u32 %v1120, 4294901760
    %1122 = vmatpush.msra.mxu0 %v1121
    %v1123 = vand.u32 %v856, 4294901760
    %1124 = vmatmul.f32.gmra.mxu0 %v1123
    %v1125 = vpop.f32.mrf.mxu0
    %v1126 = vadd.f32 %v1102, %v1125
    %1127 = vdwg.mxu0
    %1128 = vmatpush.msra.mxu0 0.0
    %1129 = vmatpush.msra.mxu0 0.0
    %1130 = vmatpush.msra.mxu0 0.0
    %1131 = vmatpush.msra.mxu0 0.0
    %1132 = vmatpush.msra.mxu0 0.0
    %1133 = vmatpush.msra.mxu0 0.0
    %1134 = vmatpush.msra.mxu0 0.0
    %1135 = vmatpush.msra.mxu0 0.0
    %1136 = vmatpush.msra.mxu0 0.0
    %1137 = vmatpush.msra.mxu0 0.0
    %1138 = vmatpush.msra.mxu0 0.0
    %1139 = vmatpush.msra.mxu0 0.0
    %1140 = vmatpush.msra.mxu0 0.0
    %1141 = vmatpush.msra.mxu0 0.0
    %1142 = vmatpush.msra.mxu0 0.0
    %v1143 = vand.u32 %v845, 4294901760
    %1144 = vmatpush.msra.mxu0 %v1143
    %v1145 = vand.u32 %v856, 4294901760
    %1146 = vmatmul.f32.gmra.mxu0 %v1145
    %v1147 = vpop.f32.mrf.mxu0
    %v1148 = vadd.f32 %v1126, %v1147
    %1149 = vdwg.mxu0
    %v1152 = vrot.slane %v1148, 7
    %vm1153 = vcmask 1040384
    %v1154 = vsel %vm1153, %v1002, %v1152
    %v1156 = vlaneseq
    %vm1157 = vcmp.ge.s32.totalorder %v1156, 0
    %vm1158 = vcmp.lt.s32.totalorder %v1156, 256
    %vm1159 = vmand %vm1157, %vm1158
    %1160 = vst.msk [vmem:[#allocation3] sm:$0x3] %vm1159, %v1154
    // Predicated region
    $region22: #{tpu_custom_call.1} parent=1 // pred_check
      _
    $region23: #{tpu_custom_call.1} parent=1 // pred_check_branch
      %1162 = sbr.rel (0) target = $region25
    $region24: #{tpu_custom_call.1} parent=1 // pred_region
      %1164 = vsyncadd [#allocation4], 0
      %s1166 = sshll.u32 [#allocation3], 4
      %s1167 = int_to_ptr.vmem [resolvable:$true] %s1166
      %s1168 = sshll.u32 %s5, 4
      %s1169 = int_to_ptr.hbm [resolvable:$true] %s1168
      %1171 = dma.vmem_to_hbm [thread:$0]  %s1167, 32, %s1169, [#allocation4]
    $region25: #{tpu_custom_call.1} parent=1 // pred_fallthru
      _
    // Predicated region
    $region26: #{tpu_custom_call.1} parent=1 // pred_check
      _
    $region27: #{tpu_custom_call.1} parent=1 // pred_check_branch
      %1173 = sbr.rel (0) target = $region29
    $region28: #{tpu_custom_call.1} parent=1 // pred_region
      %1175 = dma.done [#allocation4], 32
    $region29: #{tpu_custom_call.1} parent=1 // pred_fallthru
      _
    %1176 = vsyncpa [#allocation4], 1

// kernel: tpu_custom_call.1
$region0: #{tpu_custom_call.1}
  #allocation0 [shape = 'u32[]', space=smem, size = 0x4, offset = 0x4, fixed_abs, tag = 'smem constant byte address 0x4 - core index']
  #allocation1 [shape = 'u32[72,128]{1,0:T(1,128)}', space=vmem, size = 0x9000, scoped, tag = 'internal scratch']
  #allocation2 [shape = 'f32[1,1]{1,0:T(1,128)S(1)}', space=vmem, size = 0x200, scoped, tag = 'scoped memory for tpu_custom_call.1']
  %s0 = inlined_call_operand.vmem [shape: f32[2,256], index: 0, kind: input, shape index: {}]
  %s1 = inlined_call_operand.vmem [shape: f32[32,2], index: 1, kind: input, shape index: {}]
  %s2 = inlined_call_operand.vmem [shape: f32[32,1], index: 2, kind: input, shape index: {}]
  %s3 = inlined_call_operand.vmem [shape: f32[32,32], index: 3, kind: input, shape index: {}]
  %s4 = inlined_call_operand.vmem [shape: f32[32,1], index: 4, kind: input, shape index: {}]
  %s5 = inlined_call_operand.vmem [shape: f32[32,32], index: 5, kind: input, shape index: {}]
  %s6 = inlined_call_operand.vmem [shape: f32[32,1], index: 6, kind: input, shape index: {}]
  %s7 = inlined_call_operand.vmem [shape: f32[1,32], index: 7, kind: input, shape index: {}]
  %s8 = inlined_call_operand.<no memory space> [shape: f32[1,1], index: 8, kind: input, shape index: {}]
  %s9 = inlined_call_operand.hbm [shape: f32[1,256], index: 9, kind: output, shape index: {}]
  %s10 = sld [smem:[#allocation0]]
  $region46: #{tpu_custom_call.1} parent=0
    _
  %s12 = ssub.s32 1, %s10
  %s13 = scalar_select 0, %s12, %s10
  %v14 = vstv %s8
  %15 = vst [vmem:[#allocation2] sm:$0x1] %v14
  $region1: #{tpu_custom_call.1} parent=0
    #allocation3 [shape = 'u8[1024]{0}', space=vmem, size = 0x400, scoped, tag = 'output window, operand 0, single buffered']
    #allocation4 [shape = 's32[1]{0}', space=sflag, size = 0x4, scoped, tag = 'scoped memory for tpu_custom_call.1']
    %16 = vsyncpa [#allocation4], 0
    // Predicated region
    $region2: #{tpu_custom_call.1} parent=1 // pred_check
      _
    $region3: #{tpu_custom_call.1} parent=1 // pred_check_branch
      %18 = sbr.rel (0) target = $region5
    $region4: #{tpu_custom_call.1} parent=1 // pred_region
      _
    $region5: #{tpu_custom_call.1} parent=1 // pred_fallthru
      _
    // Predicated region
    $region6: #{tpu_custom_call.1} parent=1 // pred_check
      _
    $region7: #{tpu_custom_call.1} parent=1 // pred_check_branch
      %20 = sbr.rel (0) target = $region9
    $region8: #{tpu_custom_call.1} parent=1 // pred_region
      _
    $region9: #{tpu_custom_call.1} parent=1 // pred_fallthru
      _
    // Predicated region
    $region10: #{tpu_custom_call.1} parent=1 // pred_check
      _
    $region11: #{tpu_custom_call.1} parent=1 // pred_check_branch
      %22 = sbr.rel (0) target = $region13
    $region12: #{tpu_custom_call.1} parent=1 // pred_region
      _
    $region13: #{tpu_custom_call.1} parent=1 // pred_fallthru
      _
    // Predicated region
    $region14: #{tpu_custom_call.1} parent=1 // pred_check
      _
    $region15: #{tpu_custom_call.1} parent=1 // pred_check_branch
      %24 = sbr.rel (0) target = $region17
    $region16: #{tpu_custom_call.1} parent=1 // pred_region
      _
    $region17: #{tpu_custom_call.1} parent=1 // pred_fallthru
      _
    // Predicated region
    $region18: #{tpu_custom_call.1} parent=1 // pred_check
      _
    $region19: #{tpu_custom_call.1} parent=1 // pred_check_branch
      %26 = sbr.rel (0) target = $region21
    $region20: #{tpu_custom_call.1} parent=1 // pred_region
      _
    $region21: #{tpu_custom_call.1} parent=1 // pred_fallthru
      _
    // Predicated region
    $region22: #{tpu_custom_call.1} parent=1 // pred_check
      _
    $region23: #{tpu_custom_call.1} parent=1 // pred_check_branch
      %28 = sbr.rel (0) target = $region25
    $region24: #{tpu_custom_call.1} parent=1 // pred_region
      _
    $region25: #{tpu_custom_call.1} parent=1 // pred_fallthru
      _
    // Predicated region
    $region26: #{tpu_custom_call.1} parent=1 // pred_check
      _
    $region27: #{tpu_custom_call.1} parent=1 // pred_check_branch
      %30 = sbr.rel (0) target = $region29
    $region28: #{tpu_custom_call.1} parent=1 // pred_region
      _
    $region29: #{tpu_custom_call.1} parent=1 // pred_fallthru
      _
    // Predicated region
    $region30: #{tpu_custom_call.1} parent=1 // pred_check
      _
    $region31: #{tpu_custom_call.1} parent=1 // pred_check_branch
      %32 = sbr.rel (0) target = $region33
    $region32: #{tpu_custom_call.1} parent=1 // pred_region
      _
    $region33: #{tpu_custom_call.1} parent=1 // pred_fallthru
      _
    // Predicated region
    $region34: #{tpu_custom_call.1} parent=1 // pred_check
      _
    $region35: #{tpu_custom_call.1} parent=1 // pred_check_branch
      %34 = sbr.rel (0) target = $region37
    $region36: #{tpu_custom_call.1} parent=1 // pred_region
      _
    $region37: #{tpu_custom_call.1} parent=1 // pred_fallthru
      _
    %v35 = vld [vmem:[%s0] sm:$0xf]
    %v36 = vld [vmem:[%s1] sm:$0xff]
    %v37 = vld [vmem:[%s1 + $0x8] sm:$0xff]
    %v38 = vld [vmem:[%s1 + $0x10] sm:$0xff]
    %v39 = vld [vmem:[%s1 + $0x18] sm:$0xff]
    %v40 = vld [vmem:[%s2] sm:$0xff]
    %v41 = vld [vmem:[%s2 + $0x8] sm:$0xff]
    %v42 = vld [vmem:[%s2 + $0x10] sm:$0xff]
    %v43 = vld [vmem:[%s2 + $0x18] sm:$0xff]
    %45 = vset.pattern.permute.xlu0 0
    %46 = vperm.xlu0 %45, %v36
    %v47 = vpop.permute.xlu0 %46
    %50 = vset.pattern.permute.xlu0 0
    %51 = vperm.xlu0 %50, %v37
    %v52 = vpop.permute.xlu0 %51
    %55 = vset.pattern.permute.xlu0 0
    %56 = vperm.xlu0 %55, %v38
    %v57 = vpop.permute.xlu0 %56
    %60 = vset.pattern.permute.xlu0 0
    %61 = vperm.xlu0 %60, %v39
    %v62 = vpop.permute.xlu0 %61
    %v65 = vperm.slane %v35, 0
    %v66 = vperm.slane %v35, 2
    %v69 = vperm.slane %v65, 0
    %v70 = vperm.slane %v66, 0
    %v71 = vmul.f32 %v47, %v69
    %v72 = vmul.f32 %v47, %v70
    %v73 = vmul.f32 %v52, %v69
    %v74 = vmul.f32 %v52, %v70
    %v75 = vmul.f32 %v57, %v69
    %v76 = vmul.f32 %v57, %v70
    %v77 = vmul.f32 %v62, %v69
    %v78 = vmul.f32 %v62, %v70
    %79 = vset.pattern.permute.xlu0 1
    %80 = vperm.xlu0 %79, %v36
    %v81 = vpop.permute.xlu0 %80
    %83 = vset.pattern.permute.xlu0 1
    %84 = vperm.xlu0 %83, %v37
    %v85 = vpop.permute.xlu0 %84
    %87 = vset.pattern.permute.xlu0 1
    %88 = vperm.xlu0 %87, %v38
    %v89 = vpop.permute.xlu0 %88
    %91 = vset.pattern.permute.xlu0 1
    %92 = vperm.xlu0 %91, %v39
    %v93 = vpop.permute.xlu0 %92
    %v95 = vperm.slane %v35, 1
    %v96 = vperm.slane %v35, 3
    %v99 = vperm.slane %v95, 1
    %v100 = vperm.slane %v96, 1
    %v101 = vmul.f32 %v81, %v99
    %v102 = vmul.f32 %v81, %v100
    %v103 = vmul.f32 %v85, %v99
    %v104 = vmul.f32 %v85, %v100
    %v105 = vmul.f32 %v89, %v99
    %v106 = vmul.f32 %v89, %v100
    %v107 = vmul.f32 %v93, %v99
    %v108 = vmul.f32 %v93, %v100
    %v109 = vadd.f32 %v71, %v101
    %v110 = vadd.f32 %v72, %v102
    %v111 = vadd.f32 %v73, %v103
    %v112 = vadd.f32 %v74, %v104
    %v113 = vadd.f32 %v75, %v105
    %v114 = vadd.f32 %v76, %v106
    %v115 = vadd.f32 %v77, %v107
    %v116 = vadd.f32 %v78, %v108
    %118 = vset.pattern.permute.xlu0 0
    %119 = vperm.xlu0 %118, %v40
    %v120 = vpop.permute.xlu0 %119
    %123 = vset.pattern.permute.xlu0 0
    %124 = vperm.xlu0 %123, %v41
    %v125 = vpop.permute.xlu0 %124
    %128 = vset.pattern.permute.xlu0 0
    %129 = vperm.xlu0 %128, %v42
    %v130 = vpop.permute.xlu0 %129
    %133 = vset.pattern.permute.xlu0 0
    %134 = vperm.xlu0 %133, %v43
    %v135 = vpop.permute.xlu0 %134
    %v137 = vadd.f32 %v109, %v120
    %v138 = vadd.f32 %v110, %v120
    %v139 = vadd.f32 %v111, %v125
    %v140 = vadd.f32 %v112, %v125
    %v141 = vadd.f32 %v113, %v130
    %v142 = vadd.f32 %v114, %v130
    %v143 = vadd.f32 %v115, %v135
    %v144 = vadd.f32 %v116, %v135
    %v145 = vtanh.pop %v137
    %v146 = vtanh.pop %v138
    %v147 = vtanh.pop %v139
    %v148 = vtanh.pop %v140
    %v149 = vtanh.pop %v141
    %v150 = vtanh.pop %v142
    %v151 = vtanh.pop %v143
    %v152 = vtanh.pop %v144
    %v153 = vld [vmem:[%s3] sm:$0xff]
    %v154 = vld [vmem:[%s3 + $0x8] sm:$0xff]
    %v155 = vld [vmem:[%s3 + $0x10] sm:$0xff]
    %v156 = vld [vmem:[%s3 + $0x18] sm:$0xff]
    %v157 = vld [vmem:[%s4] sm:$0xff]
    %v158 = vld [vmem:[%s4 + $0x8] sm:$0xff]
    %v159 = vld [vmem:[%s4 + $0x10] sm:$0xff]
    %v160 = vld [vmem:[%s4 + $0x18] sm:$0xff]
    %162 = vset.pattern.permute.xlu0 0
    %163 = vperm.xlu0 %162, %v157
    %v164 = vpop.permute.xlu0 %163
    %167 = vset.pattern.permute.xlu0 0
    %168 = vperm.xlu0 %167, %v158
    %v169 = vpop.permute.xlu0 %168
    %172 = vset.pattern.permute.xlu0 0
    %173 = vperm.xlu0 %172, %v159
    %v174 = vpop.permute.xlu0 %173
    %177 = vset.pattern.permute.xlu0 0
    %178 = vperm.xlu0 %177, %v160
    %v179 = vpop.permute.xlu0 %178
    %vm181 = vcmask 261120
    %v183 = vsel %vm181, %v153, 0
    %v186 = vsel %vm181, %v154, 0
    %v189 = vsel %vm181, %v155, 0
    %v192 = vsel %vm181, %v156, 0
    %194 = vmatpush.msra.mxu0 0.0
    %195 = vmatpush.msra.mxu0 0.0
    %196 = vmatpush.msra.mxu0 0.0
    %197 = vmatpush.msra.mxu0 0.0
    %198 = vmatpush.msra.mxu0 0.0
    %199 = vmatpush.msra.mxu0 0.0
    %200 = vmatpush.msra.mxu0 0.0
    %201 = vmatpush.msra.mxu0 0.0
    %202 = vmatpush.msra.mxu0 0.0
    %203 = vmatpush.msra.mxu0 0.0
    %204 = vmatpush.msra.mxu0 0.0
    %205 = vmatpush.msra.mxu0 0.0
    %v206 = vand.u32 %v151, 4294901760
    %207 = vmatpush.msra.mxu0 %v206
    %v208 = vand.u32 %v149, 4294901760
    %209 = vmatpush.msra.mxu0 %v208
    %v210 = vand.u32 %v147, 4294901760
    %211 = vmatpush.msra.mxu0 %v210
    %v212 = vand.u32 %v145, 4294901760
    %213 = vmatpush.msra.mxu0 %v212
    %v214 = vand.u32 %v183, 4294901760
    %v215 = vsub.f32 %v183, %v214
    %v216 = vand.u32 %v215, 4294901760
    %v217 = vsub.f32 %v215, %v216
    %v218 = vand.u32 %v217, 4294901760
    %219 = vmatmul.f32.gmra.mxu0 %v218
    %v220 = vpop.f32.mrf.mxu0
    %v221 = vadd.f32 %v164, %v220
    %v222 = vand.u32 %v186, 4294901760
    %v223 = vsub.f32 %v186, %v222
    %v224 = vand.u32 %v223, 4294901760
    %v225 = vsub.f32 %v223, %v224
    %v226 = vand.u32 %v225, 4294901760
    %227 = vmatmul.f32.gmra.mxu0 %v226
    %v228 = vpop.f32.mrf.mxu0
    %v229 = vadd.f32 %v169, %v228
    %v230 = vand.u32 %v189, 4294901760
    %v231 = vsub.f32 %v189, %v230
    %v232 = vand.u32 %v231, 4294901760
    %v233 = vsub.f32 %v231, %v232
    %v234 = vand.u32 %v233, 4294901760
    %235 = vmatmul.f32.gmra.mxu0 %v234
    %v236 = vpop.f32.mrf.mxu0
    %v237 = vadd.f32 %v174, %v236
    %v238 = vand.u32 %v192, 4294901760
    %v239 = vsub.f32 %v192, %v238
    %v240 = vand.u32 %v239, 4294901760
    %v241 = vsub.f32 %v239, %v240
    %v242 = vand.u32 %v241, 4294901760
    %243 = vmatmul.f32.gmra.mxu0 %v242
    %v244 = vpop.f32.mrf.mxu0
    %v245 = vadd.f32 %v179, %v244
    %246 = vdwg.mxu0
    %247 = vmatpush.msra.mxu0 0.0
    %248 = vmatpush.msra.mxu0 0.0
    %249 = vmatpush.msra.mxu0 0.0
    %250 = vmatpush.msra.mxu0 0.0
    %251 = vmatpush.msra.mxu0 0.0
    %252 = vmatpush.msra.mxu0 0.0
    %253 = vmatpush.msra.mxu0 0.0
    %254 = vmatpush.msra.mxu0 0.0
    %255 = vmatpush.msra.mxu0 0.0
    %256 = vmatpush.msra.mxu0 0.0
    %257 = vmatpush.msra.mxu0 0.0
    %258 = vmatpush.msra.mxu0 0.0
    %v259 = vand.u32 %v151, 4294901760
    %v260 = vsub.f32 %v151, %v259
    %v261 = vand.u32 %v260, 4294901760
    %v262 = vsub.f32 %v260, %v261
    %v263 = vand.u32 %v262, 4294901760
    %264 = vmatpush.msra.mxu0 %v263
    %v265 = vand.u32 %v149, 4294901760
    %v266 = vsub.f32 %v149, %v265
    %v267 = vand.u32 %v266, 4294901760
    %v268 = vsub.f32 %v266, %v267
    %v269 = vand.u32 %v268, 4294901760
    %270 = vmatpush.msra.mxu0 %v269
    %v271 = vand.u32 %v147, 4294901760
    %v272 = vsub.f32 %v147, %v271
    %v273 = vand.u32 %v272, 4294901760
    %v274 = vsub.f32 %v272, %v273
    %v275 = vand.u32 %v274, 4294901760
    %276 = vmatpush.msra.mxu0 %v275
    %v277 = vand.u32 %v145, 4294901760
    %v278 = vsub.f32 %v145, %v277
    %v279 = vand.u32 %v278, 4294901760
    %v280 = vsub.f32 %v278, %v279
    %v281 = vand.u32 %v280, 4294901760
    %282 = vmatpush.msra.mxu0 %v281
    %v283 = vand.u32 %v183, 4294901760
    %284 = vmatmul.f32.gmra.mxu0 %v283
    %v285 = vpop.f32.mrf.mxu0
    %v286 = vadd.f32 %v221, %v285
    %v287 = vand.u32 %v186, 4294901760
    %288 = vmatmul.f32.gmra.mxu0 %v287
    %v289 = vpop.f32.mrf.mxu0
    %v290 = vadd.f32 %v229, %v289
    %v291 = vand.u32 %v189, 4294901760
    %292 = vmatmul.f32.gmra.mxu0 %v291
    %v293 = vpop.f32.mrf.mxu0
    %v294 = vadd.f32 %v237, %v293
    %v295 = vand.u32 %v192, 4294901760
    %296 = vmatmul.f32.gmra.mxu0 %v295
    %v297 = vpop.f32.mrf.mxu0
    %v298 = vadd.f32 %v245, %v297
    %299 = vdwg.mxu0
    %300 = vmatpush.msra.mxu0 0.0
    %301 = vmatpush.msra.mxu0 0.0
    %302 = vmatpush.msra.mxu0 0.0
    %303 = vmatpush.msra.mxu0 0.0
    %304 = vmatpush.msra.mxu0 0.0
    %305 = vmatpush.msra.mxu0 0.0
    %306 = vmatpush.msra.mxu0 0.0
    %307 = vmatpush.msra.mxu0 0.0
    %308 = vmatpush.msra.mxu0 0.0
    %309 = vmatpush.msra.mxu0 0.0
    %310 = vmatpush.msra.mxu0 0.0
    %311 = vmatpush.msra.mxu0 0.0
    %v312 = vand.u32 %v151, 4294901760
    %v313 = vsub.f32 %v151, %v312
    %314 = vmatpush.msra.mxu0 %v313
    %v315 = vand.u32 %v149, 4294901760
    %v316 = vsub.f32 %v149, %v315
    %317 = vmatpush.msra.mxu0 %v316
    %v318 = vand.u32 %v147, 4294901760
    %v319 = vsub.f32 %v147, %v318
    %320 = vmatpush.msra.mxu0 %v319
    %v321 = vand.u32 %v145, 4294901760
    %v322 = vsub.f32 %v145, %v321
    %323 = vmatpush.msra.mxu0 %v322
    %v324 = vand.u32 %v183, 4294901760
    %v325 = vsub.f32 %v183, %v324
    %326 = vmatmul.f32.gmra.mxu0 %v325
    %v327 = vpop.f32.mrf.mxu0
    %v328 = vadd.f32 %v286, %v327
    %v329 = vand.u32 %v186, 4294901760
    %v330 = vsub.f32 %v186, %v329
    %331 = vmatmul.f32.gmra.mxu0 %v330
    %v332 = vpop.f32.mrf.mxu0
    %v333 = vadd.f32 %v290, %v332
    %v334 = vand.u32 %v189, 4294901760
    %v335 = vsub.f32 %v189, %v334
    %336 = vmatmul.f32.gmra.mxu0 %v335
    %v337 = vpop.f32.mrf.mxu0
    %v338 = vadd.f32 %v294, %v337
    %v339 = vand.u32 %v192, 4294901760
    %v340 = vsub.f32 %v192, %v339
    %341 = vmatmul.f32.gmra.mxu0 %v340
    %v342 = vpop.f32.mrf.mxu0
    %v343 = vadd.f32 %v298, %v342
    %344 = vdwg.mxu0
    %345 = vmatpush.msra.mxu0 0.0
    %346 = vmatpush.msra.mxu0 0.0
    %347 = vmatpush.msra.mxu0 0.0
    %348 = vmatpush.msra.mxu0 0.0
    %349 = vmatpush.msra.mxu0 0.0
    %350 = vmatpush.msra.mxu0 0.0
    %351 = vmatpush.msra.mxu0 0.0
    %352 = vmatpush.msra.mxu0 0.0
    %353 = vmatpush.msra.mxu0 0.0
    %354 = vmatpush.msra.mxu0 0.0
    %355 = vmatpush.msra.mxu0 0.0
    %356 = vmatpush.msra.mxu0 0.0
    %v357 = vand.u32 %v151, 4294901760
    %358 = vmatpush.msra.mxu0 %v357
    %v359 = vand.u32 %v149, 4294901760
    %360 = vmatpush.msra.mxu0 %v359
    %v361 = vand.u32 %v147, 4294901760
    %362 = vmatpush.msra.mxu0 %v361
    %v363 = vand.u32 %v145, 4294901760
    %364 = vmatpush.msra.mxu0 %v363
    %v365 = vand.u32 %v183, 4294901760
    %v366 = vsub.f32 %v183, %v365
    %v367 = vand.u32 %v366, 4294901760
    %368 = vmatmul.f32.gmra.mxu0 %v367
    %v369 = vpop.f32.mrf.mxu0
    %v370 = vadd.f32 %v328, %v369
    %v371 = vand.u32 %v186, 4294901760
    %v372 = vsub.f32 %v186, %v371
    %v373 = vand.u32 %v372, 4294901760
    %374 = vmatmul.f32.gmra.mxu0 %v373
    %v375 = vpop.f32.mrf.mxu0
    %v376 = vadd.f32 %v333, %v375
    %v377 = vand.u32 %v189, 4294901760
    %v378 = vsub.f32 %v189, %v377
    %v379 = vand.u32 %v378, 4294901760
    %380 = vmatmul.f32.gmra.mxu0 %v379
    %v381 = vpop.f32.mrf.mxu0
    %v382 = vadd.f32 %v338, %v381
    %v383 = vand.u32 %v192, 4294901760
    %v384 = vsub.f32 %v192, %v383
    %v385 = vand.u32 %v384, 4294901760
    %386 = vmatmul.f32.gmra.mxu0 %v385
    %v387 = vpop.f32.mrf.mxu0
    %v388 = vadd.f32 %v343, %v387
    %389 = vdwg.mxu0
    %390 = vmatpush.msra.mxu0 0.0
    %391 = vmatpush.msra.mxu0 0.0
    %392 = vmatpush.msra.mxu0 0.0
    %393 = vmatpush.msra.mxu0 0.0
    %394 = vmatpush.msra.mxu0 0.0
    %395 = vmatpush.msra.mxu0 0.0
    %396 = vmatpush.msra.mxu0 0.0
    %397 = vmatpush.msra.mxu0 0.0
    %398 = vmatpush.msra.mxu0 0.0
    %399 = vmatpush.msra.mxu0 0.0
    %400 = vmatpush.msra.mxu0 0.0
    %401 = vmatpush.msra.mxu0 0.0
    %v402 = vand.u32 %v151, 4294901760
    %v403 = vsub.f32 %v151, %v402
    %v404 = vand.u32 %v403, 4294901760
    %405 = vmatpush.msra.mxu0 %v404
    %v406 = vand.u32 %v149, 4294901760
    %v407 = vsub.f32 %v149, %v406
    %v408 = vand.u32 %v407, 4294901760
    %409 = vmatpush.msra.mxu0 %v408
    %v410 = vand.u32 %v147, 4294901760
    %v411 = vsub.f32 %v147, %v410
    %v412 = vand.u32 %v411, 4294901760
    %413 = vmatpush.msra.mxu0 %v412
    %v414 = vand.u32 %v145, 4294901760
    %v415 = vsub.f32 %v145, %v414
    %v416 = vand.u32 %v415, 4294901760
    %417 = vmatpush.msra.mxu0 %v416
    %v418 = vand.u32 %v183, 4294901760
    %419 = vmatmul.f32.gmra.mxu0 %v418
    %v420 = vpop.f32.mrf.mxu0
    %v421 = vadd.f32 %v370, %v420
    %v422 = vand.u32 %v186, 4294901760
    %423 = vmatmul.f32.gmra.mxu0 %v422
    %v424 = vpop.f32.mrf.mxu0
    %v425 = vadd.f32 %v376, %v424
    %v426 = vand.u32 %v189, 4294901760
    %427 = vmatmul.f32.gmra.mxu0 %v426
    %v428 = vpop.f32.mrf.mxu0
    %v429 = vadd.f32 %v382, %v428
    %v430 = vand.u32 %v192, 4294901760
    %431 = vmatmul.f32.gmra.mxu0 %v430
    %v432 = vpop.f32.mrf.mxu0
    %v433 = vadd.f32 %v388, %v432
    %434 = vdwg.mxu0
    %435 = vmatpush.msra.mxu0 0.0
    %436 = vmatpush.msra.mxu0 0.0
    %437 = vmatpush.msra.mxu0 0.0
    %438 = vmatpush.msra.mxu0 0.0
    %439 = vmatpush.msra.mxu0 0.0
    %440 = vmatpush.msra.mxu0 0.0
    %441 = vmatpush.msra.mxu0 0.0
    %442 = vmatpush.msra.mxu0 0.0
    %443 = vmatpush.msra.mxu0 0.0
    %444 = vmatpush.msra.mxu0 0.0
    %445 = vmatpush.msra.mxu0 0.0
    %446 = vmatpush.msra.mxu0 0.0
    %v447 = vand.u32 %v151, 4294901760
    %448 = vmatpush.msra.mxu0 %v447
    %v449 = vand.u32 %v149, 4294901760
    %450 = vmatpush.msra.mxu0 %v449
    %v451 = vand.u32 %v147, 4294901760
    %452 = vmatpush.msra.mxu0 %v451
    %v453 = vand.u32 %v145, 4294901760
    %454 = vmatpush.msra.mxu0 %v453
    %v455 = vand.u32 %v183, 4294901760
    %456 = vmatmul.f32.gmra.mxu0 %v455
    %v457 = vpop.f32.mrf.mxu0
    %v458 = vadd.f32 %v421, %v457
    %v459 = vand.u32 %v186, 4294901760
    %460 = vmatmul.f32.gmra.mxu0 %v459
    %v461 = vpop.f32.mrf.mxu0
    %v462 = vadd.f32 %v425, %v461
    %v463 = vand.u32 %v189, 4294901760
    %464 = vmatmul.f32.gmra.mxu0 %v463
    %v465 = vpop.f32.mrf.mxu0
    %v466 = vadd.f32 %v429, %v465
    %v467 = vand.u32 %v192, 4294901760
    %468 = vmatmul.f32.gmra.mxu0 %v467
    %v469 = vpop.f32.mrf.mxu0
    %v470 = vadd.f32 %v433, %v469
    %471 = vdwg.mxu0
    %472 = vmatpush.msra.mxu0 0.0
    %473 = vmatpush.msra.mxu0 0.0
    %474 = vmatpush.msra.mxu0 0.0
    %475 = vmatpush.msra.mxu0 0.0
    %476 = vmatpush.msra.mxu0 0.0
    %477 = vmatpush.msra.mxu0 0.0
    %478 = vmatpush.msra.mxu0 0.0
    %479 = vmatpush.msra.mxu0 0.0
    %480 = vmatpush.msra.mxu0 0.0
    %481 = vmatpush.msra.mxu0 0.0
    %482 = vmatpush.msra.mxu0 0.0
    %483 = vmatpush.msra.mxu0 0.0
    %v484 = vand.u32 %v152, 4294901760
    %485 = vmatpush.msra.mxu0 %v484
    %v486 = vand.u32 %v150, 4294901760
    %487 = vmatpush.msra.mxu0 %v486
    %v488 = vand.u32 %v148, 4294901760
    %489 = vmatpush.msra.mxu0 %v488
    %v490 = vand.u32 %v146, 4294901760
    %491 = vmatpush.msra.mxu0 %v490
    %v492 = vand.u32 %v183, 4294901760
    %v493 = vsub.f32 %v183, %v492
    %v494 = vand.u32 %v493, 4294901760
    %v495 = vsub.f32 %v493, %v494
    %v496 = vand.u32 %v495, 4294901760
    %497 = vmatmul.f32.gmra.mxu0 %v496
    %v498 = vpop.f32.mrf.mxu0
    %v499 = vadd.f32 %v164, %v498
    %v500 = vand.u32 %v186, 4294901760
    %v501 = vsub.f32 %v186, %v500
    %v502 = vand.u32 %v501, 4294901760
    %v503 = vsub.f32 %v501, %v502
    %v504 = vand.u32 %v503, 4294901760
    %505 = vmatmul.f32.gmra.mxu0 %v504
    %v506 = vpop.f32.mrf.mxu0
    %v507 = vadd.f32 %v169, %v506
    %v508 = vand.u32 %v189, 4294901760
    %v509 = vsub.f32 %v189, %v508
    %v510 = vand.u32 %v509, 4294901760
    %v511 = vsub.f32 %v509, %v510
    %v512 = vand.u32 %v511, 4294901760
    %513 = vmatmul.f32.gmra.mxu0 %v512
    %v514 = vpop.f32.mrf.mxu0
    %v515 = vadd.f32 %v174, %v514
    %v516 = vand.u32 %v192, 4294901760
    %v517 = vsub.f32 %v192, %v516
    %v518 = vand.u32 %v517, 4294901760
    %v519 = vsub.f32 %v517, %v518
    %v520 = vand.u32 %v519, 4294901760
    %521 = vmatmul.f32.gmra.mxu0 %v520
    %v522 = vpop.f32.mrf.mxu0
    %v523 = vadd.f32 %v179, %v522
    %524 = vdwg.mxu0
    %525 = vmatpush.msra.mxu0 0.0
    %526 = vmatpush.msra.mxu0 0.0
    %527 = vmatpush.msra.mxu0 0.0
    %528 = vmatpush.msra.mxu0 0.0
    %529 = vmatpush.msra.mxu0 0.0
    %530 = vmatpush.msra.mxu0 0.0
    %531 = vmatpush.msra.mxu0 0.0
    %532 = vmatpush.msra.mxu0 0.0
    %533 = vmatpush.msra.mxu0 0.0
    %534 = vmatpush.msra.mxu0 0.0
    %535 = vmatpush.msra.mxu0 0.0
    %536 = vmatpush.msra.mxu0 0.0
    %v537 = vand.u32 %v152, 4294901760
    %v538 = vsub.f32 %v152, %v537
    %v539 = vand.u32 %v538, 4294901760
    %v540 = vsub.f32 %v538, %v539
    %v541 = vand.u32 %v540, 4294901760
    %542 = vmatpush.msra.mxu0 %v541
    %v543 = vand.u32 %v150, 4294901760
    %v544 = vsub.f32 %v150, %v543
    %v545 = vand.u32 %v544, 4294901760
    %v546 = vsub.f32 %v544, %v545
    %v547 = vand.u32 %v546, 4294901760
    %548 = vmatpush.msra.mxu0 %v547
    %v549 = vand.u32 %v148, 4294901760
    %v550 = vsub.f32 %v148, %v549
    %v551 = vand.u32 %v550, 4294901760
    %v552 = vsub.f32 %v550, %v551
    %v553 = vand.u32 %v552, 4294901760
    %554 = vmatpush.msra.mxu0 %v553
    %v555 = vand.u32 %v146, 4294901760
    %v556 = vsub.f32 %v146, %v555
    %v557 = vand.u32 %v556, 4294901760
    %v558 = vsub.f32 %v556, %v557
    %v559 = vand.u32 %v558, 4294901760
    %560 = vmatpush.msra.mxu0 %v559
    %v561 = vand.u32 %v183, 4294901760
    %562 = vmatmul.f32.gmra.mxu0 %v561
    %v563 = vpop.f32.mrf.mxu0
    %v564 = vadd.f32 %v499, %v563
    %v565 = vand.u32 %v186, 4294901760
    %566 = vmatmul.f32.gmra.mxu0 %v565
    %v567 = vpop.f32.mrf.mxu0
    %v568 = vadd.f32 %v507, %v567
    %v569 = vand.u32 %v189, 4294901760
    %570 = vmatmul.f32.gmra.mxu0 %v569
    %v571 = vpop.f32.mrf.mxu0
    %v572 = vadd.f32 %v515, %v571
    %v573 = vand.u32 %v192, 4294901760
    %574 = vmatmul.f32.gmra.mxu0 %v573
    %v575 = vpop.f32.mrf.mxu0
    %v576 = vadd.f32 %v523, %v575
    %577 = vdwg.mxu0
    %578 = vmatpush.msra.mxu0 0.0
    %579 = vmatpush.msra.mxu0 0.0
    %580 = vmatpush.msra.mxu0 0.0
    %581 = vmatpush.msra.mxu0 0.0
    %582 = vmatpush.msra.mxu0 0.0
    %583 = vmatpush.msra.mxu0 0.0
    %584 = vmatpush.msra.mxu0 0.0
    %585 = vmatpush.msra.mxu0 0.0
    %586 = vmatpush.msra.mxu0 0.0
    %587 = vmatpush.msra.mxu0 0.0
    %588 = vmatpush.msra.mxu0 0.0
    %589 = vmatpush.msra.mxu0 0.0
    %v590 = vand.u32 %v152, 4294901760
    %v591 = vsub.f32 %v152, %v590
    %592 = vmatpush.msra.mxu0 %v591
    %v593 = vand.u32 %v150, 4294901760
    %v594 = vsub.f32 %v150, %v593
    %595 = vmatpush.msra.mxu0 %v594
    %v596 = vand.u32 %v148, 4294901760
    %v597 = vsub.f32 %v148, %v596
    %598 = vmatpush.msra.mxu0 %v597
    %v599 = vand.u32 %v146, 4294901760
    %v600 = vsub.f32 %v146, %v599
    %601 = vmatpush.msra.mxu0 %v600
    %v602 = vand.u32 %v183, 4294901760
    %v603 = vsub.f32 %v183, %v602
    %604 = vmatmul.f32.gmra.mxu0 %v603
    %v605 = vpop.f32.mrf.mxu0
    %v606 = vadd.f32 %v564, %v605
    %v607 = vand.u32 %v186, 4294901760
    %v608 = vsub.f32 %v186, %v607
    %609 = vmatmul.f32.gmra.mxu0 %v608
    %v610 = vpop.f32.mrf.mxu0
    %v611 = vadd.f32 %v568, %v610
    %v612 = vand.u32 %v189, 4294901760
    %v613 = vsub.f32 %v189, %v612
    %614 = vmatmul.f32.gmra.mxu0 %v613
    %v615 = vpop.f32.mrf.mxu0
    %v616 = vadd.f32 %v572, %v615
    %v617 = vand.u32 %v192, 4294901760
    %v618 = vsub.f32 %v192, %v617
    %619 = vmatmul.f32.gmra.mxu0 %v618
    %v620 = vpop.f32.mrf.mxu0
    %v621 = vadd.f32 %v576, %v620
    %622 = vdwg.mxu0
    %623 = vmatpush.msra.mxu0 0.0
    %624 = vmatpush.msra.mxu0 0.0
    %625 = vmatpush.msra.mxu0 0.0
    %626 = vmatpush.msra.mxu0 0.0
    %627 = vmatpush.msra.mxu0 0.0
    %628 = vmatpush.msra.mxu0 0.0
    %629 = vmatpush.msra.mxu0 0.0
    %630 = vmatpush.msra.mxu0 0.0
    %631 = vmatpush.msra.mxu0 0.0
    %632 = vmatpush.msra.mxu0 0.0
    %633 = vmatpush.msra.mxu0 0.0
    %634 = vmatpush.msra.mxu0 0.0
    %v635 = vand.u32 %v152, 4294901760
    %636 = vmatpush.msra.mxu0 %v635
    %v637 = vand.u32 %v150, 4294901760
    %638 = vmatpush.msra.mxu0 %v637
    %v639 = vand.u32 %v148, 4294901760
    %640 = vmatpush.msra.mxu0 %v639
    %v641 = vand.u32 %v146, 4294901760
    %642 = vmatpush.msra.mxu0 %v641
    %v643 = vand.u32 %v183, 4294901760
    %v644 = vsub.f32 %v183, %v643
    %v645 = vand.u32 %v644, 4294901760
    %646 = vmatmul.f32.gmra.mxu0 %v645
    %v647 = vpop.f32.mrf.mxu0
    %v648 = vadd.f32 %v606, %v647
    %v649 = vand.u32 %v186, 4294901760
    %v650 = vsub.f32 %v186, %v649
    %v651 = vand.u32 %v650, 4294901760
    %652 = vmatmul.f32.gmra.mxu0 %v651
    %v653 = vpop.f32.mrf.mxu0
    %v654 = vadd.f32 %v611, %v653
    %v655 = vand.u32 %v189, 4294901760
    %v656 = vsub.f32 %v189, %v655
    %v657 = vand.u32 %v656, 4294901760
    %658 = vmatmul.f32.gmra.mxu0 %v657
    %v659 = vpop.f32.mrf.mxu0
    %v660 = vadd.f32 %v616, %v659
    %v661 = vand.u32 %v192, 4294901760
    %v662 = vsub.f32 %v192, %v661
    %v663 = vand.u32 %v662, 4294901760
    %664 = vmatmul.f32.gmra.mxu0 %v663
    %v665 = vpop.f32.mrf.mxu0
    %v666 = vadd.f32 %v621, %v665
    %667 = vdwg.mxu0
    %668 = vmatpush.msra.mxu0 0.0
    %669 = vmatpush.msra.mxu0 0.0
    %670 = vmatpush.msra.mxu0 0.0
    %671 = vmatpush.msra.mxu0 0.0
    %672 = vmatpush.msra.mxu0 0.0
    %673 = vmatpush.msra.mxu0 0.0
    %674 = vmatpush.msra.mxu0 0.0
    %675 = vmatpush.msra.mxu0 0.0
    %676 = vmatpush.msra.mxu0 0.0
    %677 = vmatpush.msra.mxu0 0.0
    %678 = vmatpush.msra.mxu0 0.0
    %679 = vmatpush.msra.mxu0 0.0
    %v680 = vand.u32 %v152, 4294901760
    %v681 = vsub.f32 %v152, %v680
    %v682 = vand.u32 %v681, 4294901760
    %683 = vmatpush.msra.mxu0 %v682
    %v684 = vand.u32 %v150, 4294901760
    %v685 = vsub.f32 %v150, %v684
    %v686 = vand.u32 %v685, 4294901760
    %687 = vmatpush.msra.mxu0 %v686
    %v688 = vand.u32 %v148, 4294901760
    %v689 = vsub.f32 %v148, %v688
    %v690 = vand.u32 %v689, 4294901760
    %691 = vmatpush.msra.mxu0 %v690
    %v692 = vand.u32 %v146, 4294901760
    %v693 = vsub.f32 %v146, %v692
    %v694 = vand.u32 %v693, 4294901760
    %695 = vmatpush.msra.mxu0 %v694
    %v696 = vand.u32 %v183, 4294901760
    %697 = vmatmul.f32.gmra.mxu0 %v696
    %v698 = vpop.f32.mrf.mxu0
    %v699 = vadd.f32 %v648, %v698
    %v700 = vand.u32 %v186, 4294901760
    %701 = vmatmul.f32.gmra.mxu0 %v700
    %v702 = vpop.f32.mrf.mxu0
    %v703 = vadd.f32 %v654, %v702
    %v704 = vand.u32 %v189, 4294901760
    %705 = vmatmul.f32.gmra.mxu0 %v704
    %v706 = vpop.f32.mrf.mxu0
    %v707 = vadd.f32 %v660, %v706
    %v708 = vand.u32 %v192, 4294901760
    %709 = vmatmul.f32.gmra.mxu0 %v708
    %v710 = vpop.f32.mrf.mxu0
    %v711 = vadd.f32 %v666, %v710
    %712 = vdwg.mxu0
    %713 = vmatpush.msra.mxu0 0.0
    %714 = vmatpush.msra.mxu0 0.0
    %715 = vmatpush.msra.mxu0 0.0
    %716 = vmatpush.msra.mxu0 0.0
    %717 = vmatpush.msra.mxu0 0.0
    %718 = vmatpush.msra.mxu0 0.0
    %719 = vmatpush.msra.mxu0 0.0
    %720 = vmatpush.msra.mxu0 0.0
    %721 = vmatpush.msra.mxu0 0.0
    %722 = vmatpush.msra.mxu0 0.0
    %723 = vmatpush.msra.mxu0 0.0
    %724 = vmatpush.msra.mxu0 0.0
    %v725 = vand.u32 %v152, 4294901760
    %726 = vmatpush.msra.mxu0 %v725
    %v727 = vand.u32 %v150, 4294901760
    %728 = vmatpush.msra.mxu0 %v727
    %v729 = vand.u32 %v148, 4294901760
    %730 = vmatpush.msra.mxu0 %v729
    %v731 = vand.u32 %v146, 4294901760
    %732 = vmatpush.msra.mxu0 %v731
    %v733 = vand.u32 %v183, 4294901760
    %734 = vmatmul.f32.gmra.mxu0 %v733
    %v735 = vpop.f32.mrf.mxu0
    %v736 = vadd.f32 %v699, %v735
    %v737 = vand.u32 %v186, 4294901760
    %738 = vmatmul.f32.gmra.mxu0 %v737
    %v739 = vpop.f32.mrf.mxu0
    %v740 = vadd.f32 %v703, %v739
    %v741 = vand.u32 %v189, 4294901760
    %742 = vmatmul.f32.gmra.mxu0 %v741
    %v743 = vpop.f32.mrf.mxu0
    %v744 = vadd.f32 %v707, %v743
    %v745 = vand.u32 %v192, 4294901760
    %746 = vmatmul.f32.gmra.mxu0 %v745
    %v747 = vpop.f32.mrf.mxu0
    %v748 = vadd.f32 %v711, %v747
    %749 = vdwg.mxu0
    %v750 = vtanh.pop %v458
    %v751 = vtanh.pop %v736
    %v752 = vtanh.pop %v462
    %v753 = vtanh.pop %v740
    %v754 = vtanh.pop %v466
    %v755 = vtanh.pop %v744
    %v756 = vtanh.pop %v470
    %v757 = vtanh.pop %v748
    %v758 = vld [vmem:[%s5] sm:$0xff]
    %v759 = vld [vmem:[%s5 + $0x8] sm:$0xff]
    %v760 = vld [vmem:[%s5 + $0x10] sm:$0xff]
    %v761 = vld [vmem:[%s5 + $0x18] sm:$0xff]
    %v762 = vld [vmem:[%s6] sm:$0xff]
    %v763 = vld [vmem:[%s6 + $0x8] sm:$0xff]
    %v764 = vld [vmem:[%s6 + $0x10] sm:$0xff]
    %v765 = vld [vmem:[%s6 + $0x18] sm:$0xff]
    %767 = vset.pattern.permute.xlu0 0
    %768 = vperm.xlu0 %767, %v762
    %v769 = vpop.permute.xlu0 %768
    %772 = vset.pattern.permute.xlu0 0
    %773 = vperm.xlu0 %772, %v763
    %v774 = vpop.permute.xlu0 %773
    %777 = vset.pattern.permute.xlu0 0
    %778 = vperm.xlu0 %777, %v764
    %v779 = vpop.permute.xlu0 %778
    %782 = vset.pattern.permute.xlu0 0
    %783 = vperm.xlu0 %782, %v765
    %v784 = vpop.permute.xlu0 %783
    %v787 = vsel %vm181, %v758, 0
    %v790 = vsel %vm181, %v759, 0
    %v793 = vsel %vm181, %v760, 0
    %v796 = vsel %vm181, %v761, 0
    %798 = vmatpush.msra.mxu0 0.0
    %799 = vmatpush.msra.mxu0 0.0
    %800 = vmatpush.msra.mxu0 0.0
    %801 = vmatpush.msra.mxu0 0.0
    %802 = vmatpush.msra.mxu0 0.0
    %803 = vmatpush.msra.mxu0 0.0
    %804 = vmatpush.msra.mxu0 0.0
    %805 = vmatpush.msra.mxu0 0.0
    %806 = vmatpush.msra.mxu0 0.0
    %807 = vmatpush.msra.mxu0 0.0
    %808 = vmatpush.msra.mxu0 0.0
    %809 = vmatpush.msra.mxu0 0.0
    %v810 = vand.u32 %v756, 4294901760
    %811 = vmatpush.msra.mxu0 %v810
    %v812 = vand.u32 %v754, 4294901760
    %813 = vmatpush.msra.mxu0 %v812
    %v814 = vand.u32 %v752, 4294901760
    %815 = vmatpush.msra.mxu0 %v814
    %v816 = vand.u32 %v750, 4294901760
    %817 = vmatpush.msra.mxu0 %v816
    %v818 = vand.u32 %v787, 4294901760
    %v819 = vsub.f32 %v787, %v818
    %v820 = vand.u32 %v819, 4294901760
    %v821 = vsub.f32 %v819, %v820
    %v822 = vand.u32 %v821, 4294901760
    %823 = vmatmul.f32.gmra.mxu0 %v822
    %v824 = vpop.f32.mrf.mxu0
    %v825 = vadd.f32 %v769, %v824
    %v826 = vand.u32 %v790, 4294901760
    %v827 = vsub.f32 %v790, %v826
    %v828 = vand.u32 %v827, 4294901760
    %v829 = vsub.f32 %v827, %v828
    %v830 = vand.u32 %v829, 4294901760
    %831 = vmatmul.f32.gmra.mxu0 %v830
    %v832 = vpop.f32.mrf.mxu0
    %v833 = vadd.f32 %v774, %v832
    %v834 = vand.u32 %v793, 4294901760
    %v835 = vsub.f32 %v793, %v834
    %v836 = vand.u32 %v835, 4294901760
    %v837 = vsub.f32 %v835, %v836
    %v838 = vand.u32 %v837, 4294901760
    %839 = vmatmul.f32.gmra.mxu0 %v838
    %v840 = vpop.f32.mrf.mxu0
    %v841 = vadd.f32 %v779, %v840
    %v842 = vand.u32 %v796, 4294901760
    %v843 = vsub.f32 %v796, %v842
    %v844 = vand.u32 %v843, 4294901760
    %v845 = vsub.f32 %v843, %v844
    %v846 = vand.u32 %v845, 4294901760
    %847 = vmatmul.f32.gmra.mxu0 %v846
    %v848 = vpop.f32.mrf.mxu0
    %v849 = vadd.f32 %v784, %v848
    %850 = vdwg.mxu0
    %851 = vmatpush.msra.mxu0 0.0
    %852 = vmatpush.msra.mxu0 0.0
    %853 = vmatpush.msra.mxu0 0.0
    %854 = vmatpush.msra.mxu0 0.0
    %855 = vmatpush.msra.mxu0 0.0
    %856 = vmatpush.msra.mxu0 0.0
    %857 = vmatpush.msra.mxu0 0.0
    %858 = vmatpush.msra.mxu0 0.0
    %859 = vmatpush.msra.mxu0 0.0
    %860 = vmatpush.msra.mxu0 0.0
    %861 = vmatpush.msra.mxu0 0.0
    %862 = vmatpush.msra.mxu0 0.0
    %v863 = vand.u32 %v756, 4294901760
    %v864 = vsub.f32 %v756, %v863
    %v865 = vand.u32 %v864, 4294901760
    %v866 = vsub.f32 %v864, %v865
    %v867 = vand.u32 %v866, 4294901760
    %868 = vmatpush.msra.mxu0 %v867
    %v869 = vand.u32 %v754, 4294901760
    %v870 = vsub.f32 %v754, %v869
    %v871 = vand.u32 %v870, 4294901760
    %v872 = vsub.f32 %v870, %v871
    %v873 = vand.u32 %v872, 4294901760
    %874 = vmatpush.msra.mxu0 %v873
    %v875 = vand.u32 %v752, 4294901760
    %v876 = vsub.f32 %v752, %v875
    %v877 = vand.u32 %v876, 4294901760
    %v878 = vsub.f32 %v876, %v877
    %v879 = vand.u32 %v878, 4294901760
    %880 = vmatpush.msra.mxu0 %v879
    %v881 = vand.u32 %v750, 4294901760
    %v882 = vsub.f32 %v750, %v881
    %v883 = vand.u32 %v882, 4294901760
    %v884 = vsub.f32 %v882, %v883
    %v885 = vand.u32 %v884, 4294901760
    %886 = vmatpush.msra.mxu0 %v885
    %v887 = vand.u32 %v787, 4294901760
    %888 = vmatmul.f32.gmra.mxu0 %v887
    %v889 = vpop.f32.mrf.mxu0
    %v890 = vadd.f32 %v825, %v889
    %v891 = vand.u32 %v790, 4294901760
    %892 = vmatmul.f32.gmra.mxu0 %v891
    %v893 = vpop.f32.mrf.mxu0
    %v894 = vadd.f32 %v833, %v893
    %v895 = vand.u32 %v793, 4294901760
    %896 = vmatmul.f32.gmra.mxu0 %v895
    %v897 = vpop.f32.mrf.mxu0
    %v898 = vadd.f32 %v841, %v897
    %v899 = vand.u32 %v796, 4294901760
    %900 = vmatmul.f32.gmra.mxu0 %v899
    %v901 = vpop.f32.mrf.mxu0
    %v902 = vadd.f32 %v849, %v901
    %903 = vdwg.mxu0
    %904 = vmatpush.msra.mxu0 0.0
    %905 = vmatpush.msra.mxu0 0.0
    %906 = vmatpush.msra.mxu0 0.0
    %907 = vmatpush.msra.mxu0 0.0
    %908 = vmatpush.msra.mxu0 0.0
    %909 = vmatpush.msra.mxu0 0.0
    %910 = vmatpush.msra.mxu0 0.0
    %911 = vmatpush.msra.mxu0 0.0
    %912 = vmatpush.msra.mxu0 0.0
    %913 = vmatpush.msra.mxu0 0.0
    %914 = vmatpush.msra.mxu0 0.0
    %915 = vmatpush.msra.mxu0 0.0
    %v916 = vand.u32 %v756, 4294901760
    %v917 = vsub.f32 %v756, %v916
    %918 = vmatpush.msra.mxu0 %v917
    %v919 = vand.u32 %v754, 4294901760
    %v920 = vsub.f32 %v754, %v919
    %921 = vmatpush.msra.mxu0 %v920
    %v922 = vand.u32 %v752, 4294901760
    %v923 = vsub.f32 %v752, %v922
    %924 = vmatpush.msra.mxu0 %v923
    %v925 = vand.u32 %v750, 4294901760
    %v926 = vsub.f32 %v750, %v925
    %927 = vmatpush.msra.mxu0 %v926
    %v928 = vand.u32 %v787, 4294901760
    %v929 = vsub.f32 %v787, %v928
    %930 = vmatmul.f32.gmra.mxu0 %v929
    %v931 = vpop.f32.mrf.mxu0
    %v932 = vadd.f32 %v890, %v931
    %v933 = vand.u32 %v790, 4294901760
    %v934 = vsub.f32 %v790, %v933
    %935 = vmatmul.f32.gmra.mxu0 %v934
    %v936 = vpop.f32.mrf.mxu0
    %v937 = vadd.f32 %v894, %v936
    %v938 = vand.u32 %v793, 4294901760
    %v939 = vsub.f32 %v793, %v938
    %940 = vmatmul.f32.gmra.mxu0 %v939
    %v941 = vpop.f32.mrf.mxu0
    %v942 = vadd.f32 %v898, %v941
    %v943 = vand.u32 %v796, 4294901760
    %v944 = vsub.f32 %v796, %v943
    %945 = vmatmul.f32.gmra.mxu0 %v944
    %v946 = vpop.f32.mrf.mxu0
    %v947 = vadd.f32 %v902, %v946
    %948 = vdwg.mxu0
    %949 = vmatpush.msra.mxu0 0.0
    %950 = vmatpush.msra.mxu0 0.0
    %951 = vmatpush.msra.mxu0 0.0
    %952 = vmatpush.msra.mxu0 0.0
    %953 = vmatpush.msra.mxu0 0.0
    %954 = vmatpush.msra.mxu0 0.0
    %955 = vmatpush.msra.mxu0 0.0
    %956 = vmatpush.msra.mxu0 0.0
    %957 = vmatpush.msra.mxu0 0.0
    %958 = vmatpush.msra.mxu0 0.0
    %959 = vmatpush.msra.mxu0 0.0
    %960 = vmatpush.msra.mxu0 0.0
    %v961 = vand.u32 %v756, 4294901760
    %962 = vmatpush.msra.mxu0 %v961
    %v963 = vand.u32 %v754, 4294901760
    %964 = vmatpush.msra.mxu0 %v963
    %v965 = vand.u32 %v752, 4294901760
    %966 = vmatpush.msra.mxu0 %v965
    %v967 = vand.u32 %v750, 4294901760
    %968 = vmatpush.msra.mxu0 %v967
    %v969 = vand.u32 %v787, 4294901760
    %v970 = vsub.f32 %v787, %v969
    %v971 = vand.u32 %v970, 4294901760
    %972 = vmatmul.f32.gmra.mxu0 %v971
    %v973 = vpop.f32.mrf.mxu0
    %v974 = vadd.f32 %v932, %v973
    %v975 = vand.u32 %v790, 4294901760
    %v976 = vsub.f32 %v790, %v975
    %v977 = vand.u32 %v976, 4294901760
    %978 = vmatmul.f32.gmra.mxu0 %v977
    %v979 = vpop.f32.mrf.mxu0
    %v980 = vadd.f32 %v937, %v979
    %v981 = vand.u32 %v793, 4294901760
    %v982 = vsub.f32 %v793, %v981
    %v983 = vand.u32 %v982, 4294901760
    %984 = vmatmul.f32.gmra.mxu0 %v983
    %v985 = vpop.f32.mrf.mxu0
    %v986 = vadd.f32 %v942, %v985
    %v987 = vand.u32 %v796, 4294901760
    %v988 = vsub.f32 %v796, %v987
    %v989 = vand.u32 %v988, 4294901760
    %990 = vmatmul.f32.gmra.mxu0 %v989
    %v991 = vpop.f32.mrf.mxu0
    %v992 = vadd.f32 %v947, %v991
    %993 = vdwg.mxu0
    %994 = vmatpush.msra.mxu0 0.0
    %995 = vmatpush.msra.mxu0 0.0
    %996 = vmatpush.msra.mxu0 0.0
    %997 = vmatpush.msra.mxu0 0.0
    %998 = vmatpush.msra.mxu0 0.0
    %999 = vmatpush.msra.mxu0 0.0
    %1000 = vmatpush.msra.mxu0 0.0
    %1001 = vmatpush.msra.mxu0 0.0
    %1002 = vmatpush.msra.mxu0 0.0
    %1003 = vmatpush.msra.mxu0 0.0
    %1004 = vmatpush.msra.mxu0 0.0
    %1005 = vmatpush.msra.mxu0 0.0
    %v1006 = vand.u32 %v756, 4294901760
    %v1007 = vsub.f32 %v756, %v1006
    %v1008 = vand.u32 %v1007, 4294901760
    %1009 = vmatpush.msra.mxu0 %v1008
    %v1010 = vand.u32 %v754, 4294901760
    %v1011 = vsub.f32 %v754, %v1010
    %v1012 = vand.u32 %v1011, 4294901760
    %1013 = vmatpush.msra.mxu0 %v1012
    %v1014 = vand.u32 %v752, 4294901760
    %v1015 = vsub.f32 %v752, %v1014
    %v1016 = vand.u32 %v1015, 4294901760
    %1017 = vmatpush.msra.mxu0 %v1016
    %v1018 = vand.u32 %v750, 4294901760
    %v1019 = vsub.f32 %v750, %v1018
    %v1020 = vand.u32 %v1019, 4294901760
    %1021 = vmatpush.msra.mxu0 %v1020
    %v1022 = vand.u32 %v787, 4294901760
    %1023 = vmatmul.f32.gmra.mxu0 %v1022
    %v1024 = vpop.f32.mrf.mxu0
    %v1025 = vadd.f32 %v974, %v1024
    %v1026 = vand.u32 %v790, 4294901760
    %1027 = vmatmul.f32.gmra.mxu0 %v1026
    %v1028 = vpop.f32.mrf.mxu0
    %v1029 = vadd.f32 %v980, %v1028
    %v1030 = vand.u32 %v793, 4294901760
    %1031 = vmatmul.f32.gmra.mxu0 %v1030
    %v1032 = vpop.f32.mrf.mxu0
    %v1033 = vadd.f32 %v986, %v1032
    %v1034 = vand.u32 %v796, 4294901760
    %1035 = vmatmul.f32.gmra.mxu0 %v1034
    %v1036 = vpop.f32.mrf.mxu0
    %v1037 = vadd.f32 %v992, %v1036
    %1038 = vdwg.mxu0
    %1039 = vmatpush.msra.mxu0 0.0
    %1040 = vmatpush.msra.mxu0 0.0
    %1041 = vmatpush.msra.mxu0 0.0
    %1042 = vmatpush.msra.mxu0 0.0
    %1043 = vmatpush.msra.mxu0 0.0
    %1044 = vmatpush.msra.mxu0 0.0
    %1045 = vmatpush.msra.mxu0 0.0
    %1046 = vmatpush.msra.mxu0 0.0
    %1047 = vmatpush.msra.mxu0 0.0
    %1048 = vmatpush.msra.mxu0 0.0
    %1049 = vmatpush.msra.mxu0 0.0
    %1050 = vmatpush.msra.mxu0 0.0
    %v1051 = vand.u32 %v756, 4294901760
    %1052 = vmatpush.msra.mxu0 %v1051
    %v1053 = vand.u32 %v754, 4294901760
    %1054 = vmatpush.msra.mxu0 %v1053
    %v1055 = vand.u32 %v752, 4294901760
    %1056 = vmatpush.msra.mxu0 %v1055
    %v1057 = vand.u32 %v750, 4294901760
    %1058 = vmatpush.msra.mxu0 %v1057
    %v1059 = vand.u32 %v787, 4294901760
    %1060 = vmatmul.f32.gmra.mxu0 %v1059
    %v1061 = vpop.f32.mrf.mxu0
    %v1062 = vadd.f32 %v1025, %v1061
    %v1063 = vand.u32 %v790, 4294901760
    %1064 = vmatmul.f32.gmra.mxu0 %v1063
    %v1065 = vpop.f32.mrf.mxu0
    %v1066 = vadd.f32 %v1029, %v1065
    %v1067 = vand.u32 %v793, 4294901760
    %1068 = vmatmul.f32.gmra.mxu0 %v1067
    %v1069 = vpop.f32.mrf.mxu0
    %v1070 = vadd.f32 %v1033, %v1069
    %v1071 = vand.u32 %v796, 4294901760
    %1072 = vmatmul.f32.gmra.mxu0 %v1071
    %v1073 = vpop.f32.mrf.mxu0
    %v1074 = vadd.f32 %v1037, %v1073
    %1075 = vdwg.mxu0
    %1076 = vmatpush.msra.mxu0 0.0
    %1077 = vmatpush.msra.mxu0 0.0
    %1078 = vmatpush.msra.mxu0 0.0
    %1079 = vmatpush.msra.mxu0 0.0
    %1080 = vmatpush.msra.mxu0 0.0
    %1081 = vmatpush.msra.mxu0 0.0
    %1082 = vmatpush.msra.mxu0 0.0
    %1083 = vmatpush.msra.mxu0 0.0
    %1084 = vmatpush.msra.mxu0 0.0
    %1085 = vmatpush.msra.mxu0 0.0
    %1086 = vmatpush.msra.mxu0 0.0
    %1087 = vmatpush.msra.mxu0 0.0
    %v1088 = vand.u32 %v757, 4294901760
    %1089 = vmatpush.msra.mxu0 %v1088
    %v1090 = vand.u32 %v755, 4294901760
    %1091 = vmatpush.msra.mxu0 %v1090
    %v1092 = vand.u32 %v753, 4294901760
    %1093 = vmatpush.msra.mxu0 %v1092
    %v1094 = vand.u32 %v751, 4294901760
    %1095 = vmatpush.msra.mxu0 %v1094
    %v1096 = vand.u32 %v787, 4294901760
    %v1097 = vsub.f32 %v787, %v1096
    %v1098 = vand.u32 %v1097, 4294901760
    %v1099 = vsub.f32 %v1097, %v1098
    %v1100 = vand.u32 %v1099, 4294901760
    %1101 = vmatmul.f32.gmra.mxu0 %v1100
    %v1102 = vpop.f32.mrf.mxu0
    %v1103 = vadd.f32 %v769, %v1102
    %v1104 = vand.u32 %v790, 4294901760
    %v1105 = vsub.f32 %v790, %v1104
    %v1106 = vand.u32 %v1105, 4294901760
    %v1107 = vsub.f32 %v1105, %v1106
    %v1108 = vand.u32 %v1107, 4294901760
    %1109 = vmatmul.f32.gmra.mxu0 %v1108
    %v1110 = vpop.f32.mrf.mxu0
    %v1111 = vadd.f32 %v774, %v1110
    %v1112 = vand.u32 %v793, 4294901760
    %v1113 = vsub.f32 %v793, %v1112
    %v1114 = vand.u32 %v1113, 4294901760
    %v1115 = vsub.f32 %v1113, %v1114
    %v1116 = vand.u32 %v1115, 4294901760
    %1117 = vmatmul.f32.gmra.mxu0 %v1116
    %v1118 = vpop.f32.mrf.mxu0
    %v1119 = vadd.f32 %v779, %v1118
    %v1120 = vand.u32 %v796, 4294901760
    %v1121 = vsub.f32 %v796, %v1120
    %v1122 = vand.u32 %v1121, 4294901760
    %v1123 = vsub.f32 %v1121, %v1122
    %v1124 = vand.u32 %v1123, 4294901760
    %1125 = vmatmul.f32.gmra.mxu0 %v1124
    %v1126 = vpop.f32.mrf.mxu0
    %v1127 = vadd.f32 %v784, %v1126
    %1128 = vdwg.mxu0
    %1129 = vmatpush.msra.mxu0 0.0
    %1130 = vmatpush.msra.mxu0 0.0
    %1131 = vmatpush.msra.mxu0 0.0
    %1132 = vmatpush.msra.mxu0 0.0
    %1133 = vmatpush.msra.mxu0 0.0
    %1134 = vmatpush.msra.mxu0 0.0
    %1135 = vmatpush.msra.mxu0 0.0
    %1136 = vmatpush.msra.mxu0 0.0
    %1137 = vmatpush.msra.mxu0 0.0
    %1138 = vmatpush.msra.mxu0 0.0
    %1139 = vmatpush.msra.mxu0 0.0
    %1140 = vmatpush.msra.mxu0 0.0
    %v1141 = vand.u32 %v757, 4294901760
    %v1142 = vsub.f32 %v757, %v1141
    %v1143 = vand.u32 %v1142, 4294901760
    %v1144 = vsub.f32 %v1142, %v1143
    %v1145 = vand.u32 %v1144, 4294901760
    %1146 = vmatpush.msra.mxu0 %v1145
    %v1147 = vand.u32 %v755, 4294901760
    %v1148 = vsub.f32 %v755, %v1147
    %v1149 = vand.u32 %v1148, 4294901760
    %v1150 = vsub.f32 %v1148, %v1149
    %v1151 = vand.u32 %v1150, 4294901760
    %1152 = vmatpush.msra.mxu0 %v1151
    %v1153 = vand.u32 %v753, 4294901760
    %v1154 = vsub.f32 %v753, %v1153
    %v1155 = vand.u32 %v1154, 4294901760
    %v1156 = vsub.f32 %v1154, %v1155
    %v1157 = vand.u32 %v1156, 4294901760
    %1158 = vmatpush.msra.mxu0 %v1157
    %v1159 = vand.u32 %v751, 4294901760
    %v1160 = vsub.f32 %v751, %v1159
    %v1161 = vand.u32 %v1160, 4294901760
    %v1162 = vsub.f32 %v1160, %v1161
    %v1163 = vand.u32 %v1162, 4294901760
    %1164 = vmatpush.msra.mxu0 %v1163
    %v1165 = vand.u32 %v787, 4294901760
    %1166 = vmatmul.f32.gmra.mxu0 %v1165
    %v1167 = vpop.f32.mrf.mxu0
    %v1168 = vadd.f32 %v1103, %v1167
    %v1169 = vand.u32 %v790, 4294901760
    %1170 = vmatmul.f32.gmra.mxu0 %v1169
    %v1171 = vpop.f32.mrf.mxu0
    %v1172 = vadd.f32 %v1111, %v1171
    %v1173 = vand.u32 %v793, 4294901760
    %1174 = vmatmul.f32.gmra.mxu0 %v1173
    %v1175 = vpop.f32.mrf.mxu0
    %v1176 = vadd.f32 %v1119, %v1175
    %v1177 = vand.u32 %v796, 4294901760
    %1178 = vmatmul.f32.gmra.mxu0 %v1177
    %v1179 = vpop.f32.mrf.mxu0
    %v1180 = vadd.f32 %v1127, %v1179
    %1181 = vdwg.mxu0
    %1182 = vmatpush.msra.mxu0 0.0
    %1183 = vmatpush.msra.mxu0 0.0
    %1184 = vmatpush.msra.mxu0 0.0
    %1185 = vmatpush.msra.mxu0 0.0
    %1186 = vmatpush.msra.mxu0 0.0
    %1187 = vmatpush.msra.mxu0 0.0
    %1188 = vmatpush.msra.mxu0 0.0
    %1189 = vmatpush.msra.mxu0 0.0
    %1190 = vmatpush.msra.mxu0 0.0
    %1191 = vmatpush.msra.mxu0 0.0
    %1192 = vmatpush.msra.mxu0 0.0
    %1193 = vmatpush.msra.mxu0 0.0
    %v1194 = vand.u32 %v757, 4294901760
    %v1195 = vsub.f32 %v757, %v1194
    %1196 = vmatpush.msra.mxu0 %v1195
    %v1197 = vand.u32 %v755, 4294901760
    %v1198 = vsub.f32 %v755, %v1197
    %1199 = vmatpush.msra.mxu0 %v1198
    %v1200 = vand.u32 %v753, 4294901760
    %v1201 = vsub.f32 %v753, %v1200
    %1202 = vmatpush.msra.mxu0 %v1201
    %v1203 = vand.u32 %v751, 4294901760
    %v1204 = vsub.f32 %v751, %v1203
    %1205 = vmatpush.msra.mxu0 %v1204
    %v1206 = vand.u32 %v787, 4294901760
    %v1207 = vsub.f32 %v787, %v1206
    %1208 = vmatmul.f32.gmra.mxu0 %v1207
    %v1209 = vpop.f32.mrf.mxu0
    %v1210 = vadd.f32 %v1168, %v1209
    %v1211 = vand.u32 %v790, 4294901760
    %v1212 = vsub.f32 %v790, %v1211
    %1213 = vmatmul.f32.gmra.mxu0 %v1212
    %v1214 = vpop.f32.mrf.mxu0
    %v1215 = vadd.f32 %v1172, %v1214
    %v1216 = vand.u32 %v793, 4294901760
    %v1217 = vsub.f32 %v793, %v1216
    %1218 = vmatmul.f32.gmra.mxu0 %v1217
    %v1219 = vpop.f32.mrf.mxu0
    %v1220 = vadd.f32 %v1176, %v1219
    %v1221 = vand.u32 %v796, 4294901760
    %v1222 = vsub.f32 %v796, %v1221
    %1223 = vmatmul.f32.gmra.mxu0 %v1222
    %v1224 = vpop.f32.mrf.mxu0
    %v1225 = vadd.f32 %v1180, %v1224
    %1226 = vdwg.mxu0
    %1227 = vmatpush.msra.mxu0 0.0
    %1228 = vmatpush.msra.mxu0 0.0
    %1229 = vmatpush.msra.mxu0 0.0
    %1230 = vmatpush.msra.mxu0 0.0
    %1231 = vmatpush.msra.mxu0 0.0
    %1232 = vmatpush.msra.mxu0 0.0
    %1233 = vmatpush.msra.mxu0 0.0
    %1234 = vmatpush.msra.mxu0 0.0
    %1235 = vmatpush.msra.mxu0 0.0
    %1236 = vmatpush.msra.mxu0 0.0
    %1237 = vmatpush.msra.mxu0 0.0
    %1238 = vmatpush.msra.mxu0 0.0
    %v1239 = vand.u32 %v757, 4294901760
    %1240 = vmatpush.msra.mxu0 %v1239
    %v1241 = vand.u32 %v755, 4294901760
    %1242 = vmatpush.msra.mxu0 %v1241
    %v1243 = vand.u32 %v753, 4294901760
    %1244 = vmatpush.msra.mxu0 %v1243
    %v1245 = vand.u32 %v751, 4294901760
    %1246 = vmatpush.msra.mxu0 %v1245
    %v1247 = vand.u32 %v787, 4294901760
    %v1248 = vsub.f32 %v787, %v1247
    %v1249 = vand.u32 %v1248, 4294901760
    %1250 = vmatmul.f32.gmra.mxu0 %v1249
    %v1251 = vpop.f32.mrf.mxu0
    %v1252 = vadd.f32 %v1210, %v1251
    %v1253 = vand.u32 %v790, 4294901760
    %v1254 = vsub.f32 %v790, %v1253
    %v1255 = vand.u32 %v1254, 4294901760
    %1256 = vmatmul.f32.gmra.mxu0 %v1255
    %v1257 = vpop.f32.mrf.mxu0
    %v1258 = vadd.f32 %v1215, %v1257
    %v1259 = vand.u32 %v793, 4294901760
    %v1260 = vsub.f32 %v793, %v1259
    %v1261 = vand.u32 %v1260, 4294901760
    %1262 = vmatmul.f32.gmra.mxu0 %v1261
    %v1263 = vpop.f32.mrf.mxu0
    %v1264 = vadd.f32 %v1220, %v1263
    %v1265 = vand.u32 %v796, 4294901760
    %v1266 = vsub.f32 %v796, %v1265
    %v1267 = vand.u32 %v1266, 4294901760
    %1268 = vmatmul.f32.gmra.mxu0 %v1267
    %v1269 = vpop.f32.mrf.mxu0
    %v1270 = vadd.f32 %v1225, %v1269
    %1271 = vdwg.mxu0
    %1272 = vmatpush.msra.mxu0 0.0
    %1273 = vmatpush.msra.mxu0 0.0
    %1274 = vmatpush.msra.mxu0 0.0
    %1275 = vmatpush.msra.mxu0 0.0
    %1276 = vmatpush.msra.mxu0 0.0
    %1277 = vmatpush.msra.mxu0 0.0
    %1278 = vmatpush.msra.mxu0 0.0
    %1279 = vmatpush.msra.mxu0 0.0
    %1280 = vmatpush.msra.mxu0 0.0
    %1281 = vmatpush.msra.mxu0 0.0
    %1282 = vmatpush.msra.mxu0 0.0
    %1283 = vmatpush.msra.mxu0 0.0
    %v1284 = vand.u32 %v757, 4294901760
    %v1285 = vsub.f32 %v757, %v1284
    %v1286 = vand.u32 %v1285, 4294901760
    %1287 = vmatpush.msra.mxu0 %v1286
    %v1288 = vand.u32 %v755, 4294901760
    %v1289 = vsub.f32 %v755, %v1288
    %v1290 = vand.u32 %v1289, 4294901760
    %1291 = vmatpush.msra.mxu0 %v1290
    %v1292 = vand.u32 %v753, 4294901760
    %v1293 = vsub.f32 %v753, %v1292
    %v1294 = vand.u32 %v1293, 4294901760
    %1295 = vmatpush.msra.mxu0 %v1294
    %v1296 = vand.u32 %v751, 4294901760
    %v1297 = vsub.f32 %v751, %v1296
    %v1298 = vand.u32 %v1297, 4294901760
    %1299 = vmatpush.msra.mxu0 %v1298
    %v1300 = vand.u32 %v787, 4294901760
    %1301 = vmatmul.f32.gmra.mxu0 %v1300
    %v1302 = vpop.f32.mrf.mxu0
    %v1303 = vadd.f32 %v1252, %v1302
    %v1304 = vand.u32 %v790, 4294901760
    %1305 = vmatmul.f32.gmra.mxu0 %v1304
    %v1306 = vpop.f32.mrf.mxu0
    %v1307 = vadd.f32 %v1258, %v1306
    %v1308 = vand.u32 %v793, 4294901760
    %1309 = vmatmul.f32.gmra.mxu0 %v1308
    %v1310 = vpop.f32.mrf.mxu0
    %v1311 = vadd.f32 %v1264, %v1310
    %v1312 = vand.u32 %v796, 4294901760
    %1313 = vmatmul.f32.gmra.mxu0 %v1312
    %v1314 = vpop.f32.mrf.mxu0
    %v1315 = vadd.f32 %v1270, %v1314
    %1316 = vdwg.mxu0
    %1317 = vmatpush.msra.mxu0 0.0
    %1318 = vmatpush.msra.mxu0 0.0
    %1319 = vmatpush.msra.mxu0 0.0
    %1320 = vmatpush.msra.mxu0 0.0
    %1321 = vmatpush.msra.mxu0 0.0
    %1322 = vmatpush.msra.mxu0 0.0
    %1323 = vmatpush.msra.mxu0 0.0
    %1324 = vmatpush.msra.mxu0 0.0
    %1325 = vmatpush.msra.mxu0 0.0
    %1326 = vmatpush.msra.mxu0 0.0
    %1327 = vmatpush.msra.mxu0 0.0
    %1328 = vmatpush.msra.mxu0 0.0
    %v1329 = vand.u32 %v757, 4294901760
    %1330 = vmatpush.msra.mxu0 %v1329
    %v1331 = vand.u32 %v755, 4294901760
    %1332 = vmatpush.msra.mxu0 %v1331
    %v1333 = vand.u32 %v753, 4294901760
    %1334 = vmatpush.msra.mxu0 %v1333
    %v1335 = vand.u32 %v751, 4294901760
    %1336 = vmatpush.msra.mxu0 %v1335
    %v1337 = vand.u32 %v787, 4294901760
    %1338 = vmatmul.f32.gmra.mxu0 %v1337
    %v1339 = vpop.f32.mrf.mxu0
    %v1340 = vadd.f32 %v1303, %v1339
    %v1341 = vand.u32 %v790, 4294901760
    %1342 = vmatmul.f32.gmra.mxu0 %v1341
    %v1343 = vpop.f32.mrf.mxu0
    %v1344 = vadd.f32 %v1307, %v1343
    %v1345 = vand.u32 %v793, 4294901760
    %1346 = vmatmul.f32.gmra.mxu0 %v1345
    %v1347 = vpop.f32.mrf.mxu0
    %v1348 = vadd.f32 %v1311, %v1347
    %v1349 = vand.u32 %v796, 4294901760
    %1350 = vmatmul.f32.gmra.mxu0 %v1349
    %v1351 = vpop.f32.mrf.mxu0
    %v1352 = vadd.f32 %v1315, %v1351
    %1353 = vdwg.mxu0
    %v1354 = vtanh.pop %v1062
    %v1355 = vtanh.pop %v1340
    %v1356 = vtanh.pop %v1066
    %v1357 = vtanh.pop %v1344
    %v1358 = vtanh.pop %v1070
    %v1359 = vtanh.pop %v1348
    %v1360 = vtanh.pop %v1074
    %v1361 = vtanh.pop %v1352
    %v1362 = vld [vmem:[%s7] sm:$0x1]
    %v1363 = vld [vmem:[#allocation2] sm:$0x1]
    %1365 = vset.pattern.permute.xlu0 0
    %1366 = vperm.xlu0 %1365, %v1363
    %v1367 = vpop.permute.xlu0 %1366
    %v1369 = vperm.slane %v1367, 0
    %v1371 = vsel %vm181, %v1362, 0
    %1373 = vmatpush.msra.mxu0 0.0
    %1374 = vmatpush.msra.mxu0 0.0
    %1375 = vmatpush.msra.mxu0 0.0
    %1376 = vmatpush.msra.mxu0 0.0
    %1377 = vmatpush.msra.mxu0 0.0
    %1378 = vmatpush.msra.mxu0 0.0
    %1379 = vmatpush.msra.mxu0 0.0
    %1380 = vmatpush.msra.mxu0 0.0
    %1381 = vmatpush.msra.mxu0 0.0
    %1382 = vmatpush.msra.mxu0 0.0
    %1383 = vmatpush.msra.mxu0 0.0
    %1384 = vmatpush.msra.mxu0 0.0
    %v1385 = vand.u32 %v1360, 4294901760
    %1386 = vmatpush.msra.mxu0 %v1385
    %v1387 = vand.u32 %v1358, 4294901760
    %1388 = vmatpush.msra.mxu0 %v1387
    %v1389 = vand.u32 %v1356, 4294901760
    %1390 = vmatpush.msra.mxu0 %v1389
    %v1391 = vand.u32 %v1354, 4294901760
    %1392 = vmatpush.msra.mxu0 %v1391
    %v1393 = vand.u32 %v1371, 4294901760
    %v1394 = vsub.f32 %v1371, %v1393
    %v1395 = vand.u32 %v1394, 4294901760
    %v1396 = vsub.f32 %v1394, %v1395
    %v1397 = vand.u32 %v1396, 4294901760
    %1398 = vmatmul.f32.gmra.mxu0 %v1397
    %v1399 = vpop.f32.mrf.mxu0
    %v1400 = vadd.f32 %v1369, %v1399
    %1401 = vdwg.mxu0
    %1402 = vmatpush.msra.mxu0 0.0
    %1403 = vmatpush.msra.mxu0 0.0
    %1404 = vmatpush.msra.mxu0 0.0
    %1405 = vmatpush.msra.mxu0 0.0
    %1406 = vmatpush.msra.mxu0 0.0
    %1407 = vmatpush.msra.mxu0 0.0
    %1408 = vmatpush.msra.mxu0 0.0
    %1409 = vmatpush.msra.mxu0 0.0
    %1410 = vmatpush.msra.mxu0 0.0
    %1411 = vmatpush.msra.mxu0 0.0
    %1412 = vmatpush.msra.mxu0 0.0
    %1413 = vmatpush.msra.mxu0 0.0
    %v1414 = vand.u32 %v1360, 4294901760
    %v1415 = vsub.f32 %v1360, %v1414
    %v1416 = vand.u32 %v1415, 4294901760
    %v1417 = vsub.f32 %v1415, %v1416
    %v1418 = vand.u32 %v1417, 4294901760
    %1419 = vmatpush.msra.mxu0 %v1418
    %v1420 = vand.u32 %v1358, 4294901760
    %v1421 = vsub.f32 %v1358, %v1420
    %v1422 = vand.u32 %v1421, 4294901760
    %v1423 = vsub.f32 %v1421, %v1422
    %v1424 = vand.u32 %v1423, 4294901760
    %1425 = vmatpush.msra.mxu0 %v1424
    %v1426 = vand.u32 %v1356, 4294901760
    %v1427 = vsub.f32 %v1356, %v1426
    %v1428 = vand.u32 %v1427, 4294901760
    %v1429 = vsub.f32 %v1427, %v1428
    %v1430 = vand.u32 %v1429, 4294901760
    %1431 = vmatpush.msra.mxu0 %v1430
    %v1432 = vand.u32 %v1354, 4294901760
    %v1433 = vsub.f32 %v1354, %v1432
    %v1434 = vand.u32 %v1433, 4294901760
    %v1435 = vsub.f32 %v1433, %v1434
    %v1436 = vand.u32 %v1435, 4294901760
    %1437 = vmatpush.msra.mxu0 %v1436
    %v1438 = vand.u32 %v1371, 4294901760
    %1439 = vmatmul.f32.gmra.mxu0 %v1438
    %v1440 = vpop.f32.mrf.mxu0
    %v1441 = vadd.f32 %v1400, %v1440
    %1442 = vdwg.mxu0
    %1443 = vmatpush.msra.mxu0 0.0
    %1444 = vmatpush.msra.mxu0 0.0
    %1445 = vmatpush.msra.mxu0 0.0
    %1446 = vmatpush.msra.mxu0 0.0
    %1447 = vmatpush.msra.mxu0 0.0
    %1448 = vmatpush.msra.mxu0 0.0
    %1449 = vmatpush.msra.mxu0 0.0
    %1450 = vmatpush.msra.mxu0 0.0
    %1451 = vmatpush.msra.mxu0 0.0
    %1452 = vmatpush.msra.mxu0 0.0
    %1453 = vmatpush.msra.mxu0 0.0
    %1454 = vmatpush.msra.mxu0 0.0
    %v1455 = vand.u32 %v1360, 4294901760
    %v1456 = vsub.f32 %v1360, %v1455
    %1457 = vmatpush.msra.mxu0 %v1456
    %v1458 = vand.u32 %v1358, 4294901760
    %v1459 = vsub.f32 %v1358, %v1458
    %1460 = vmatpush.msra.mxu0 %v1459
    %v1461 = vand.u32 %v1356, 4294901760
    %v1462 = vsub.f32 %v1356, %v1461
    %1463 = vmatpush.msra.mxu0 %v1462
    %v1464 = vand.u32 %v1354, 4294901760
    %v1465 = vsub.f32 %v1354, %v1464
    %1466 = vmatpush.msra.mxu0 %v1465
    %v1467 = vand.u32 %v1371, 4294901760
    %v1468 = vsub.f32 %v1371, %v1467
    %1469 = vmatmul.f32.gmra.mxu0 %v1468
    %v1470 = vpop.f32.mrf.mxu0
    %v1471 = vadd.f32 %v1441, %v1470
    %1472 = vdwg.mxu0
    %1473 = vmatpush.msra.mxu0 0.0
    %1474 = vmatpush.msra.mxu0 0.0
    %1475 = vmatpush.msra.mxu0 0.0
    %1476 = vmatpush.msra.mxu0 0.0
    %1477 = vmatpush.msra.mxu0 0.0
    %1478 = vmatpush.msra.mxu0 0.0
    %1479 = vmatpush.msra.mxu0 0.0
    %1480 = vmatpush.msra.mxu0 0.0
    %1481 = vmatpush.msra.mxu0 0.0
    %1482 = vmatpush.msra.mxu0 0.0
    %1483 = vmatpush.msra.mxu0 0.0
    %1484 = vmatpush.msra.mxu0 0.0
    %v1485 = vand.u32 %v1360, 4294901760
    %1486 = vmatpush.msra.mxu0 %v1485
    %v1487 = vand.u32 %v1358, 4294901760
    %1488 = vmatpush.msra.mxu0 %v1487
    %v1489 = vand.u32 %v1356, 4294901760
    %1490 = vmatpush.msra.mxu0 %v1489
    %v1491 = vand.u32 %v1354, 4294901760
    %1492 = vmatpush.msra.mxu0 %v1491
    %v1493 = vand.u32 %v1371, 4294901760
    %v1494 = vsub.f32 %v1371, %v1493
    %v1495 = vand.u32 %v1494, 4294901760
    %1496 = vmatmul.f32.gmra.mxu0 %v1495
    %v1497 = vpop.f32.mrf.mxu0
    %v1498 = vadd.f32 %v1471, %v1497
    %1499 = vdwg.mxu0
    %1500 = vmatpush.msra.mxu0 0.0
    %1501 = vmatpush.msra.mxu0 0.0
    %1502 = vmatpush.msra.mxu0 0.0
    %1503 = vmatpush.msra.mxu0 0.0
    %1504 = vmatpush.msra.mxu0 0.0
    %1505 = vmatpush.msra.mxu0 0.0
    %1506 = vmatpush.msra.mxu0 0.0
    %1507 = vmatpush.msra.mxu0 0.0
    %1508 = vmatpush.msra.mxu0 0.0
    %1509 = vmatpush.msra.mxu0 0.0
    %1510 = vmatpush.msra.mxu0 0.0
    %1511 = vmatpush.msra.mxu0 0.0
    %v1512 = vand.u32 %v1360, 4294901760
    %v1513 = vsub.f32 %v1360, %v1512
    %v1514 = vand.u32 %v1513, 4294901760
    %1515 = vmatpush.msra.mxu0 %v1514
    %v1516 = vand.u32 %v1358, 4294901760
    %v1517 = vsub.f32 %v1358, %v1516
    %v1518 = vand.u32 %v1517, 4294901760
    %1519 = vmatpush.msra.mxu0 %v1518
    %v1520 = vand.u32 %v1356, 4294901760
    %v1521 = vsub.f32 %v1356, %v1520
    %v1522 = vand.u32 %v1521, 4294901760
    %1523 = vmatpush.msra.mxu0 %v1522
    %v1524 = vand.u32 %v1354, 4294901760
    %v1525 = vsub.f32 %v1354, %v1524
    %v1526 = vand.u32 %v1525, 4294901760
    %1527 = vmatpush.msra.mxu0 %v1526
    %v1528 = vand.u32 %v1371, 4294901760
    %1529 = vmatmul.f32.gmra.mxu0 %v1528
    %v1530 = vpop.f32.mrf.mxu0
    %v1531 = vadd.f32 %v1498, %v1530
    %1532 = vdwg.mxu0
    %1533 = vmatpush.msra.mxu0 0.0
    %1534 = vmatpush.msra.mxu0 0.0
    %1535 = vmatpush.msra.mxu0 0.0
    %1536 = vmatpush.msra.mxu0 0.0
    %1537 = vmatpush.msra.mxu0 0.0
    %1538 = vmatpush.msra.mxu0 0.0
    %1539 = vmatpush.msra.mxu0 0.0
    %1540 = vmatpush.msra.mxu0 0.0
    %1541 = vmatpush.msra.mxu0 0.0
    %1542 = vmatpush.msra.mxu0 0.0
    %1543 = vmatpush.msra.mxu0 0.0
    %1544 = vmatpush.msra.mxu0 0.0
    %v1545 = vand.u32 %v1360, 4294901760
    %1546 = vmatpush.msra.mxu0 %v1545
    %v1547 = vand.u32 %v1358, 4294901760
    %1548 = vmatpush.msra.mxu0 %v1547
    %v1549 = vand.u32 %v1356, 4294901760
    %1550 = vmatpush.msra.mxu0 %v1549
    %v1551 = vand.u32 %v1354, 4294901760
    %1552 = vmatpush.msra.mxu0 %v1551
    %v1553 = vand.u32 %v1371, 4294901760
    %1554 = vmatmul.f32.gmra.mxu0 %v1553
    %v1555 = vpop.f32.mrf.mxu0
    %v1556 = vadd.f32 %v1531, %v1555
    %1557 = vdwg.mxu0
    %1558 = vmatpush.msra.mxu0 0.0
    %1559 = vmatpush.msra.mxu0 0.0
    %1560 = vmatpush.msra.mxu0 0.0
    %1561 = vmatpush.msra.mxu0 0.0
    %1562 = vmatpush.msra.mxu0 0.0
    %1563 = vmatpush.msra.mxu0 0.0
    %1564 = vmatpush.msra.mxu0 0.0
    %1565 = vmatpush.msra.mxu0 0.0
    %1566 = vmatpush.msra.mxu0 0.0
    %1567 = vmatpush.msra.mxu0 0.0
    %1568 = vmatpush.msra.mxu0 0.0
    %1569 = vmatpush.msra.mxu0 0.0
    %v1570 = vand.u32 %v1361, 4294901760
    %1571 = vmatpush.msra.mxu0 %v1570
    %v1572 = vand.u32 %v1359, 4294901760
    %1573 = vmatpush.msra.mxu0 %v1572
    %v1574 = vand.u32 %v1357, 4294901760
    %1575 = vmatpush.msra.mxu0 %v1574
    %v1576 = vand.u32 %v1355, 4294901760
    %1577 = vmatpush.msra.mxu0 %v1576
    %v1578 = vand.u32 %v1371, 4294901760
    %v1579 = vsub.f32 %v1371, %v1578
    %v1580 = vand.u32 %v1579, 4294901760
    %v1581 = vsub.f32 %v1579, %v1580
    %v1582 = vand.u32 %v1581, 4294901760
    %1583 = vmatmul.f32.gmra.mxu0 %v1582
    %v1584 = vpop.f32.mrf.mxu0
    %v1585 = vadd.f32 %v1369, %v1584
    %1586 = vdwg.mxu0
    %1587 = vmatpush.msra.mxu0 0.0
    %1588 = vmatpush.msra.mxu0 0.0
    %1589 = vmatpush.msra.mxu0 0.0
    %1590 = vmatpush.msra.mxu0 0.0
    %1591 = vmatpush.msra.mxu0 0.0
    %1592 = vmatpush.msra.mxu0 0.0
    %1593 = vmatpush.msra.mxu0 0.0
    %1594 = vmatpush.msra.mxu0 0.0
    %1595 = vmatpush.msra.mxu0 0.0
    %1596 = vmatpush.msra.mxu0 0.0
    %1597 = vmatpush.msra.mxu0 0.0
    %1598 = vmatpush.msra.mxu0 0.0
    %v1599 = vand.u32 %v1361, 4294901760
    %v1600 = vsub.f32 %v1361, %v1599
    %v1601 = vand.u32 %v1600, 4294901760
    %v1602 = vsub.f32 %v1600, %v1601
    %v1603 = vand.u32 %v1602, 4294901760
    %1604 = vmatpush.msra.mxu0 %v1603
    %v1605 = vand.u32 %v1359, 4294901760
    %v1606 = vsub.f32 %v1359, %v1605
    %v1607 = vand.u32 %v1606, 4294901760
    %v1608 = vsub.f32 %v1606, %v1607
    %v1609 = vand.u32 %v1608, 4294901760
    %1610 = vmatpush.msra.mxu0 %v1609
    %v1611 = vand.u32 %v1357, 4294901760
    %v1612 = vsub.f32 %v1357, %v1611
    %v1613 = vand.u32 %v1612, 4294901760
    %v1614 = vsub.f32 %v1612, %v1613
    %v1615 = vand.u32 %v1614, 4294901760
    %1616 = vmatpush.msra.mxu0 %v1615
    %v1617 = vand.u32 %v1355, 4294901760
    %v1618 = vsub.f32 %v1355, %v1617
    %v1619 = vand.u32 %v1618, 4294901760
    %v1620 = vsub.f32 %v1618, %v1619
    %v1621 = vand.u32 %v1620, 4294901760
    %1622 = vmatpush.msra.mxu0 %v1621
    %v1623 = vand.u32 %v1371, 4294901760
    %1624 = vmatmul.f32.gmra.mxu0 %v1623
    %v1625 = vpop.f32.mrf.mxu0
    %v1626 = vadd.f32 %v1585, %v1625
    %1627 = vdwg.mxu0
    %1628 = vmatpush.msra.mxu0 0.0
    %1629 = vmatpush.msra.mxu0 0.0
    %1630 = vmatpush.msra.mxu0 0.0
    %1631 = vmatpush.msra.mxu0 0.0
    %1632 = vmatpush.msra.mxu0 0.0
    %1633 = vmatpush.msra.mxu0 0.0
    %1634 = vmatpush.msra.mxu0 0.0
    %1635 = vmatpush.msra.mxu0 0.0
    %1636 = vmatpush.msra.mxu0 0.0
    %1637 = vmatpush.msra.mxu0 0.0
    %1638 = vmatpush.msra.mxu0 0.0
    %1639 = vmatpush.msra.mxu0 0.0
    %v1640 = vand.u32 %v1361, 4294901760
    %v1641 = vsub.f32 %v1361, %v1640
    %1642 = vmatpush.msra.mxu0 %v1641
    %v1643 = vand.u32 %v1359, 4294901760
    %v1644 = vsub.f32 %v1359, %v1643
    %1645 = vmatpush.msra.mxu0 %v1644
    %v1646 = vand.u32 %v1357, 4294901760
    %v1647 = vsub.f32 %v1357, %v1646
    %1648 = vmatpush.msra.mxu0 %v1647
    %v1649 = vand.u32 %v1355, 4294901760
    %v1650 = vsub.f32 %v1355, %v1649
    %1651 = vmatpush.msra.mxu0 %v1650
    %v1652 = vand.u32 %v1371, 4294901760
    %v1653 = vsub.f32 %v1371, %v1652
    %1654 = vmatmul.f32.gmra.mxu0 %v1653
    %v1655 = vpop.f32.mrf.mxu0
    %v1656 = vadd.f32 %v1626, %v1655
    %1657 = vdwg.mxu0
    %1658 = vmatpush.msra.mxu0 0.0
    %1659 = vmatpush.msra.mxu0 0.0
    %1660 = vmatpush.msra.mxu0 0.0
    %1661 = vmatpush.msra.mxu0 0.0
    %1662 = vmatpush.msra.mxu0 0.0
    %1663 = vmatpush.msra.mxu0 0.0
    %1664 = vmatpush.msra.mxu0 0.0
    %1665 = vmatpush.msra.mxu0 0.0
    %1666 = vmatpush.msra.mxu0 0.0
    %1667 = vmatpush.msra.mxu0 0.0
    %1668 = vmatpush.msra.mxu0 0.0
    %1669 = vmatpush.msra.mxu0 0.0
    %v1670 = vand.u32 %v1361, 4294901760
    %1671 = vmatpush.msra.mxu0 %v1670
    %v1672 = vand.u32 %v1359, 4294901760
    %1673 = vmatpush.msra.mxu0 %v1672
    %v1674 = vand.u32 %v1357, 4294901760
    %1675 = vmatpush.msra.mxu0 %v1674
    %v1676 = vand.u32 %v1355, 4294901760
    %1677 = vmatpush.msra.mxu0 %v1676
    %v1678 = vand.u32 %v1371, 4294901760
    %v1679 = vsub.f32 %v1371, %v1678
    %v1680 = vand.u32 %v1679, 4294901760
    %1681 = vmatmul.f32.gmra.mxu0 %v1680
    %v1682 = vpop.f32.mrf.mxu0
    %v1683 = vadd.f32 %v1656, %v1682
    %1684 = vdwg.mxu0
    %1685 = vmatpush.msra.mxu0 0.0
    %1686 = vmatpush.msra.mxu0 0.0
    %1687 = vmatpush.msra.mxu0 0.0
    %1688 = vmatpush.msra.mxu0 0.0
    %1689 = vmatpush.msra.mxu0 0.0
    %1690 = vmatpush.msra.mxu0 0.0
    %1691 = vmatpush.msra.mxu0 0.0
    %1692 = vmatpush.msra.mxu0 0.0
    %1693 = vmatpush.msra.mxu0 0.0
    %1694 = vmatpush.msra.mxu0 0.0
    %1695 = vmatpush.msra.mxu0 0.0
    %1696 = vmatpush.msra.mxu0 0.0
    %v1697 = vand.u32 %v1361, 4294901760
    %v1698 = vsub.f32 %v1361, %v1697
    %v1699 = vand.u32 %v1698, 4294901760
    %1700 = vmatpush.msra.mxu0 %v1699
    %v1701 = vand.u32 %v1359, 4294901760
    %v1702 = vsub.f32 %v1359, %v1701
    %v1703 = vand.u32 %v1702, 4294901760
    %1704 = vmatpush.msra.mxu0 %v1703
    %v1705 = vand.u32 %v1357, 4294901760
    %v1706 = vsub.f32 %v1357, %v1705
    %v1707 = vand.u32 %v1706, 4294901760
    %1708 = vmatpush.msra.mxu0 %v1707
    %v1709 = vand.u32 %v1355, 4294901760
    %v1710 = vsub.f32 %v1355, %v1709
    %v1711 = vand.u32 %v1710, 4294901760
    %1712 = vmatpush.msra.mxu0 %v1711
    %v1713 = vand.u32 %v1371, 4294901760
    %1714 = vmatmul.f32.gmra.mxu0 %v1713
    %v1715 = vpop.f32.mrf.mxu0
    %v1716 = vadd.f32 %v1683, %v1715
    %1717 = vdwg.mxu0
    %1718 = vmatpush.msra.mxu0 0.0
    %1719 = vmatpush.msra.mxu0 0.0
    %1720 = vmatpush.msra.mxu0 0.0
    %1721 = vmatpush.msra.mxu0 0.0
    %1722 = vmatpush.msra.mxu0 0.0
    %1723 = vmatpush.msra.mxu0 0.0
    %1724 = vmatpush.msra.mxu0 0.0
    %1725 = vmatpush.msra.mxu0 0.0
    %1726 = vmatpush.msra.mxu0 0.0
    %1727 = vmatpush.msra.mxu0 0.0
    %1728 = vmatpush.msra.mxu0 0.0
    %1729 = vmatpush.msra.mxu0 0.0
    %v1730 = vand.u32 %v1361, 4294901760
    %1731 = vmatpush.msra.mxu0 %v1730
    %v1732 = vand.u32 %v1359, 4294901760
    %1733 = vmatpush.msra.mxu0 %v1732
    %v1734 = vand.u32 %v1357, 4294901760
    %1735 = vmatpush.msra.mxu0 %v1734
    %v1736 = vand.u32 %v1355, 4294901760
    %1737 = vmatpush.msra.mxu0 %v1736
    %v1738 = vand.u32 %v1371, 4294901760
    %1739 = vmatmul.f32.gmra.mxu0 %v1738
    %v1740 = vpop.f32.mrf.mxu0
    %v1741 = vadd.f32 %v1716, %v1740
    %1742 = vdwg.mxu0
    %v1745 = vrot.slane %v1741, 7
    %vm1746 = vcmask 1040384
    %v1747 = vsel %vm1746, %v1556, %v1745
    %v1749 = vlaneseq
    %vm1750 = vcmp.ge.s32.totalorder %v1749, 0
    %vm1751 = vcmp.lt.s32.totalorder %v1749, 256
    %vm1752 = vmand %vm1750, %vm1751
    %1753 = vst.msk [vmem:[#allocation3] sm:$0x3] %vm1752, %v1747
    // Predicated region
    $region38: #{tpu_custom_call.1} parent=1 // pred_check
      _
    $region39: #{tpu_custom_call.1} parent=1 // pred_check_branch
      %1755 = sbr.rel (0) target = $region41
    $region40: #{tpu_custom_call.1} parent=1 // pred_region
      %1757 = vsyncadd [#allocation4], 0
      %s1759 = sshll.u32 [#allocation3], 4
      %s1760 = int_to_ptr.vmem [resolvable:$true] %s1759
      %s1761 = sshll.u32 %s9, 4
      %s1762 = int_to_ptr.hbm [resolvable:$true] %s1761
      %1764 = dma.vmem_to_hbm [thread:$0]  %s1760, 32, %s1762, [#allocation4]
    $region41: #{tpu_custom_call.1} parent=1 // pred_fallthru
      _
    // Predicated region
    $region42: #{tpu_custom_call.1} parent=1 // pred_check
      _
    $region43: #{tpu_custom_call.1} parent=1 // pred_check_branch
      %1766 = sbr.rel (0) target = $region45
    $region44: #{tpu_custom_call.1} parent=1 // pred_region
      %1768 = dma.done [#allocation4], 32
    $region45: #{tpu_custom_call.1} parent=1 // pred_fallthru
      _
    %1769 = vsyncpa [#allocation4], 1

</llo_original>
